<compile_context>
chip_gen: v5e
topology: v5e:2x2
jax: 0.10.0
libtpu: 0.0.40
codegen_flags: <defaults>
</compile_context>

<pallas_src>
import functools

import numpy as np
import jax
import jax.numpy as jnp
from jax.experimental import pallas as pl
from jax.experimental.pallas import tpu as pltpu

_LANE = 128
_SUBLANE = 8


def _round_up(x, m):
    return ((int(x) + m - 1) // m) * m


def _pick_batch_tile(B):
    tb = min(256, _round_up(B, _SUBLANE))
    if B >= 32:
        # keep at least two batch tiles so both v7x TensorCores get work,
        # and a multiple of 16 sublanes for bf16 packing.
        tb = min(tb, _round_up((B + 1) // 2, 16))
    return tb


def _vmem_budget(tb, in_pad, out_pad, weight_ops, n_emb, m_spa, max_width):
    w_bytes = sum(int(np.prod(op.shape)) * op.dtype.itemsize for op in weight_ops)
    io_bytes = (tb * in_pad + tb * out_pad) * 4
    act_bytes = 4 * tb * max_width * 4            # a few live f32 activations
    scratch_bytes = n_emb * tb * m_spa * 4
    total = 2 * (w_bytes + io_bytes) + act_bytes + scratch_bytes + (2 << 20)
    return int(min(max(total, 4 << 20), 48 << 20))   # safe on v5e/v6e/v7x


# ----------------------- fully fused DLRM forward kernel --------------------

def _dlrm_fwd_kernel(off_ref, idx_ref, x_ref, *refs,
                     n_bot, n_top_rest, n_emb, m_spa, pairs, n_pairs_pad,
                     row_base, idx_base, noff, bot_acts, top_acts, tb,
                     unroll_rows):
    q = 0
    bot = refs[q:q + 2 * n_bot]; q += 2 * n_bot
    tab_ref = refs[q]; q += 1
    w0x_ref, w0z_ref, bias0_ref = refs[q], refs[q + 1], refs[q + 2]; q += 3
    top = refs[q:q + 2 * n_top_rest]; q += 2 * n_top_rest
    o_ref = refs[q]; q += 1
    emb_scs = refs[q:q + n_emb]

    # ---------------- bottom MLP: fused bf16 MXU matmuls, f32 epilogue ------
    h = x_ref[...]
    for i, act in enumerate(bot_acts):
        w = bot[2 * i][...]
        b = bot[2 * i + 1][...]
        y = jnp.dot(h.astype(w.dtype), w, preferred_element_type=jnp.float32) + b
        h = jax.nn.sigmoid(y) if act == "sigmoid" else jnp.maximum(y, 0.0)
    # Only lanes [:m_spa] of h are real features; padded lanes are inert
    # because the matching rows of w0x are zero (no separate masking pass).

    # -------- EmbeddingBag(mode='sum'): in-VMEM gather, no per-row DMA ------
    bag0 = pl.program_id(0) * tb

    def gather_row(r):
        for k in range(n_emb):
            start = off_ref[k * noff + bag0 + r]
            end = off_ref[k * noff + bag0 + r + 1]

            def add_row(p, acc, k=k):
                row = idx_ref[idx_base[k] + p]
                return acc + tab_ref[pl.ds(row_base[k] + row, 1), :]

            acc = jax.lax.fori_loop(start, end, add_row,
                                    jnp.zeros((1, m_spa), jnp.float32))
            emb_scs[k][pl.ds(r, 1), :] = acc          # one store per bag

    if unroll_rows:                                    # static row index stores
        for r in range(tb):
            gather_row(r)
    else:
        def row_body(r, carry):
            gather_row(r)
            return carry
        jax.lax.fori_loop(0, tb, row_body, 0)

    # ---------------- pairwise feature interactions (lower triangle) --------
    feats = [h[:, :m_spa]] + [sc[...] for sc in emb_scs]
    cols = [jnp.sum(feats[i] * feats[j], axis=-1, keepdims=True)
            for (i, j) in pairs]
    cols += [jnp.zeros_like(cols[0])] * (n_pairs_pad - len(pairs))
    zflat = jnp.concatenate(cols, axis=-1)             # (tb, n_pairs_pad)

    # ---------------- top MLP; layer 0 split into x-part + z-part -----------
    y = (jnp.dot(h.astype(w0x_ref.dtype), w0x_ref[...],
                 preferred_element_type=jnp.float32)
         + jnp.dot(zflat.astype(w0z_ref.dtype), w0z_ref[...],
                   preferred_element_type=jnp.float32)
         + bias0_ref[...])
    h = jax.nn.sigmoid(y) if top_acts[0] == "sigmoid" else jnp.maximum(y, 0.0)
    for i, act in enumerate(top_acts[1:]):
        w = top[2 * i][...]
        b = top[2 * i + 1][...]
        y = jnp.dot(h.astype(w.dtype), w, preferred_element_type=jnp.float32) + b
        h = jax.nn.sigmoid(y) if act == "sigmoid" else jnp.maximum(y, 0.0)

    o_ref[...] = h.astype(o_ref.dtype)


# ------------------------------- DLRM model ---------------------------------

def _pack_layer(W, b, act):
    """PyTorch-style (out,in) weight -> pre-transposed, lane-padded bf16 (in_pad,out_pad)."""
    n_out, n_in = W.shape
    in_pad = _round_up(n_in, _LANE)
    out_pad = _round_up(n_out, _LANE)
    wt = jnp.zeros((in_pad, out_pad), jnp.float32).at[:n_in, :n_out].set(W.T)
    bp = jnp.zeros((1, out_pad), jnp.float32).at[0, :n_out].set(b)
    return wt.astype(jnp.bfloat16), bp, act


class DLRMNetPallas:
    def __init__(self, m_spa, ln_emb, ln_bot, ln_top,
                 arch_interaction_itself=False,
                 sigmoid_bot=-1, sigmoid_top=-1,
                 loss_threshold=0.0, key=None):
        if key is None:
            key = jax.random.PRNGKey(0)
        self.arch_interaction_itself = arch_interaction_itself
        self.loss_threshold = loss_threshold
        self.m_spa = int(m_spa)
        self.n_emb = len(ln_emb)
        self.nf = 1 + self.n_emb
        off = 1 if arch_interaction_itself else 0
        self.pairs = tuple((i, j) for i in range(self.nf) for j in range(i + off))
        self.n_pairs = len(self.pairs)
        self.n_pairs_pad = _round_up(max(self.n_pairs, 1), _SUBLANE)
        self.top_out = int(ln_top[-1])
        assert int(ln_bot[-1]) == self.m_spa
        assert int(ln_top[0]) == self.m_spa + self.n_pairs

        # embedding tables at native m_spa width (no 8x lane padding),
        # concatenated row-wise so one VMEM-resident operand serves all features
        self.emb_raw, row_base, rows = [], [], 0
        for n in ln_emb:
            key, kk = jax.random.split(key)
            bound = float(np.sqrt(1.0 / int(n)))
            t = jax.random.uniform(kk, (int(n), self.m_spa), jnp.float32,
                                   -bound, bound)
            self.emb_raw.append(t)
            row_base.append(rows)
            rows += int(n)
        self.row_base = tuple(row_base)
        self.table_all = jnp.concatenate(self.emb_raw, axis=0)   # (rows, m_spa)
        self.v_W_l = [None] * self.n_emb          # weighted_pooling=None

        self.bot_raw, key = self._create_mlp(ln_bot, sigmoid_bot, key)
        self.top_raw, key = self._create_mlp(ln_top, sigmoid_top, key)
        self.bot_pk = [_pack_layer(W, b, a) for (W, b, a) in self.bot_raw]
        self.bot_in_pad = self.bot_pk[0][0].shape[0]
        self.bot_out_pad = self.bot_pk[-1][0].shape[1]

        # top layer 0 is split: x-part consumes the padded bottom-MLP output,
        # z-part consumes the n_pairs interaction columns.
        W0, b0, act0 = self.top_raw[0]
        out0 = W0.shape[0]
        out0_pad = _round_up(out0, _LANE)
        w0x = jnp.zeros((self.bot_out_pad, out0_pad), jnp.float32)
        w0x = w0x.at[:self.m_spa, :out0].set(W0.T[:self.m_spa])
        w0z = jnp.zeros((self.n_pairs_pad, out0_pad), jnp.float32)
        w0z = w0z.at[:self.n_pairs, :out0].set(W0.T[self.m_spa:])
        b0p = jnp.zeros((1, out0_pad), jnp.float32).at[0, :out0].set(b0)
        self.top0 = (w0x.astype(jnp.bfloat16), w0z.astype(jnp.bfloat16), b0p, act0)
        self.top_rest_pk = [_pack_layer(W, b, a) for (W, b, a) in self.top_raw[1:]]
        self.out_pad = (self.top_rest_pk[-1][0].shape[1]
                        if self.top_rest_pk else out0_pad)

    def _create_mlp(self, ln, sigmoid_layer, key):
        layers = []
        for i in range(len(ln) - 1):
            n, m = int(ln[i]), int(ln[i + 1])
            key, kw, kb = jax.random.split(key, 3)
            W = jax.random.normal(kw, (m, n), jnp.float32) * np.sqrt(2.0 / (m + n))
            b = jax.random.normal(kb, (m,), jnp.float32) * np.sqrt(1.0 / m)
            act = "sigmoid" if i == sigmoid_layer else "relu"
            layers.append((W, b, act))
        return layers, key

    def forward(self, dense_x, lS_o, lS_i):
        B, d_in = dense_x.shape
        tb = _pick_batch_tile(B)
        B_pad = _round_up(B, tb)
        noff = B_pad + 1

        x_in = jnp.pad(dense_x.astype(jnp.float32),
                       ((0, B_pad - B), (0, self.bot_in_pad - d_in)))

        # scalar-prefetch tables: per-feature offsets extended with L so the
        # padded bags are empty, plus the concatenated index list.
        offs, idxs, idx_base, base = [], [], [], 0
        for k in range(self.n_emb):
            L = int(lS_i[k].shape[0])
            nb = int(lS_o[k].shape[0])
            offs.append(jnp.concatenate(
                [lS_o[k].astype(jnp.int32),
                 jnp.full((noff - nb,), L, jnp.int32)]))
            idxs.append(lS_i[k].astype(jnp.int32))
            idx_base.append(base)
            base += L
        off_all = jnp.concatenate(offs)
        idx_all = jnp.concatenate(idxs)

        bot_acts = tuple(a for (_, _, a) in self.bot_pk)
        top_acts = (self.top0[3],) + tuple(a for (_, _, a) in self.top_rest_pk)

        weight_ops = []
        for (w, b, _) in self.bot_pk:
            weight_ops += [w, b]
        weight_ops += [self.table_all, self.top0[0], self.top0[1], self.top0[2]]
        for (w, b, _) in self.top_rest_pk:
            weight_ops += [w, b]

        max_width = max([self.bot_in_pad] + [op.shape[1] for op in weight_ops])
        vmem = _vmem_budget(tb, self.bot_in_pad, self.out_pad, weight_ops,
                            self.n_emb, self.m_spa, max_width)

        grid_spec = pltpu.PrefetchScalarGridSpec(
            num_scalar_prefetch=2,
            grid=(B_pad // tb,),
            in_specs=[pl.BlockSpec((tb, self.bot_in_pad),
                                   lambda g, off, idx: (g, 0))] +
                     [pl.BlockSpec(op.shape, lambda g, off, idx: (0, 0))
                      for op in weight_ops],
            out_specs=pl.BlockSpec((tb, self.out_pad),
                                   lambda g, off, idx: (g, 0)),
            scratch_shapes=[pltpu.VMEM((tb, self.m_spa), jnp.float32)
                            for _ in range(self.n_emb)])

        kernel = functools.partial(
            _dlrm_fwd_kernel,
            n_bot=len(self.bot_pk), n_top_rest=len(self.top_rest_pk),
            n_emb=self.n_emb, m_spa=self.m_spa, pairs=self.pairs,
            n_pairs_pad=self.n_pairs_pad, row_base=self.row_base,
            idx_base=tuple(idx_base), noff=noff,
            bot_acts=bot_acts, top_acts=top_acts, tb=tb,
            unroll_rows=(tb <= 32))

        p_pad = pl.pallas_call(
            kernel,
            out_shape=jax.ShapeDtypeStruct((B_pad, self.out_pad), jnp.float32),
            grid_spec=grid_spec,
            compiler_params=pltpu.CompilerParams(
                dimension_semantics=("parallel",),
                vmem_limit_bytes=vmem),
        )(off_all, idx_all, x_in, *weight_ops)

        p = p_pad[:B, :self.top_out]
        if 0.0 < self.loss_threshold < 1.0:
            p = jnp.clip(p, self.loss_threshold, 1.0 - self.loss_threshold)
        return p, None, None    # (z, avg_dims, avg_bits)


# ------------------------ pure-JAX reference (check) ------------------------

def reference_forward(model, dense_x, lS_o, lS_i):
    bf16 = jnp.bfloat16

    def mlp(x, layers):
        for (W, b, act) in layers:   # mirror the kernel: bf16 operands, f32 acc
            y = jnp.dot(x.astype(bf16), W.T.astype(bf16),
                        preferred_element_type=jnp.float32) + b
            x = jax.nn.sigmoid(y) if act == "sigmoid" else jnp.maximum(y, 0.0)
        return x

    x = mlp(dense_x, model.bot_raw)
    ly = []
    for k, table in enumerate(model.emb_raw):
        idx, off = lS_i[k], lS_o[k]
        seg = jnp.searchsorted(off, jnp.arange(idx.shape[0], dtype=off.dtype),
                               side="right") - 1
        ly.append(jax.ops.segment_sum(table[idx], seg,
                                      num_segments=off.shape[0]))
    feats = [x] + ly
    cols = [jnp.sum(feats[i] * feats[j], axis=-1, keepdims=True)
            for (i, j) in model.pairs]
    R = jnp.concatenate([x] + cols, axis=1)
    p = mlp(R, model.top_raw)
    if 0.0 < model.loss_threshold < 1.0:
        p = jnp.clip(p, model.loss_threshold, 1.0 - model.loss_threshold)
    return p


# ----------------------------------- main -----------------------------------

if __name__ == "__main__":
    root = jax.random.PRNGKey(0)
    k_params, k_dense, k_idx = jax.random.split(root, 3)

    B = 8                                  # batch
    m_spa = 16                             # embedding dim (== ln_bot[-1])
    ln_emb = np.array([40, 32, 24])        # 3 sparse features
    ln_bot = np.array([13, 32, 16])
    nf = 1 + len(ln_emb)
    n_pairs = nf * (nf - 1) // 2           # arch_interaction_itself=False
    ln_top = np.array([m_spa + n_pairs, 32, 1])

    model = DLRMNetPallas(m_spa, ln_emb, ln_bot, ln_top,
                          sigmoid_top=len(ln_top) - 2,   # final layer sigmoid
                          key=k_params)

    dense_x = jax.random.normal(k_dense, (B, int(ln_bot[0])), jnp.float32)

    bag = 2                                # 2 indices per sample per feature
    lS_o, lS_i = [], []
    idx_keys = jax.random.split(k_idx, len(ln_emb))
    for k in range(len(ln_emb)):
        lS_i.append(jax.random.randint(idx_keys[k], (B * bag,), 0,
                                       int(ln_emb[k]), dtype=jnp.int32))
        lS_o.append(jnp.arange(B, dtype=jnp.int32) * bag)

    fwd = jax.jit(model.forward)
    p, avg_dims, avg_bits = fwd(dense_x, lS_o, lS_i)
    jax.block_until_ready(p)

    p_ref = reference_forward(model, dense_x, lS_o, lS_i)
    assert p.shape == (B, 1)
    assert np.allclose(np.asarray(p), np.asarray(p_ref), atol=5e-3, rtol=5e-3), \
        (np.asarray(p), np.asarray(p_ref))

    print("KERNEL_OK")
</pallas_src>

<mosaic_0001>
module attributes {stable_mosaic.version = 11 : i64} {
  func.func @_dlrm_fwd_kernel(%arg0: i32, %arg1: memref<27xi32, #tpu.memory_space<smem>>, %arg2: memref<48xi32, #tpu.memory_space<smem>>, %arg3: memref<8x128xf32, #tpu.memory_space<vmem>>, %arg4: memref<128x128xbf16, #tpu.memory_space<vmem>>, %arg5: memref<1x128xf32, #tpu.memory_space<vmem>>, %arg6: memref<128x128xbf16, #tpu.memory_space<vmem>>, %arg7: memref<1x128xf32, #tpu.memory_space<vmem>>, %arg8: memref<96x16xf32, #tpu.memory_space<vmem>>, %arg9: memref<128x128xbf16, #tpu.memory_space<vmem>>, %arg10: memref<8x128xbf16, #tpu.memory_space<vmem>>, %arg11: memref<1x128xf32, #tpu.memory_space<vmem>>, %arg12: memref<128x128xbf16, #tpu.memory_space<vmem>>, %arg13: memref<1x128xf32, #tpu.memory_space<vmem>>, %arg14: memref<8x128xf32, #tpu.memory_space<vmem>>, %arg15: memref<8x16xf32, #tpu.memory_space<vmem>>, %arg16: memref<8x16xf32, #tpu.memory_space<vmem>>, %arg17: memref<8x16xf32, #tpu.memory_space<vmem>>) attributes {dimension_semantics = [#tpu.dimension_semantics<parallel>], iteration_bounds = array<i64: 1>, scalar_prefetch = 2 : i64, scratch_operands = 3 : i64, tpu.core_type = #tpu.core_type<tc>, window_params = [{transform_indices = @transform_0, window_bounds = array<i64: 8, 128>}, {pipeline_mode = #tpu.pipeline_mode<synchronous>, transform_indices = @transform_1, window_bounds = array<i64: 128, 128>}, {pipeline_mode = #tpu.pipeline_mode<synchronous>, transform_indices = @transform_2, window_bounds = array<i64: 1, 128>}, {pipeline_mode = #tpu.pipeline_mode<synchronous>, transform_indices = @transform_3, window_bounds = array<i64: 128, 128>}, {pipeline_mode = #tpu.pipeline_mode<synchronous>, transform_indices = @transform_4, window_bounds = array<i64: 1, 128>}, {pipeline_mode = #tpu.pipeline_mode<synchronous>, transform_indices = @transform_5, window_bounds = array<i64: 96, 16>}, {pipeline_mode = #tpu.pipeline_mode<synchronous>, transform_indices = @transform_6, window_bounds = array<i64: 128, 128>}, {pipeline_mode = #tpu.pipeline_mode<synchronous>, transform_indices = @transform_7, window_bounds = array<i64: 8, 128>}, {pipeline_mode = #tpu.pipeline_mode<synchronous>, transform_indices = @transform_8, window_bounds = array<i64: 1, 128>}, {pipeline_mode = #tpu.pipeline_mode<synchronous>, transform_indices = @transform_9, window_bounds = array<i64: 128, 128>}, {pipeline_mode = #tpu.pipeline_mode<synchronous>, transform_indices = @transform_10, window_bounds = array<i64: 1, 128>}, {transform_indices = @transform_11, window_bounds = array<i64: 8, 128>}]} {
    %c0 = arith.constant 0 : index
    %c0_0 = arith.constant 0 : index
    %0 = vector.load %arg3[%c0, %c0_0] : memref<8x128xf32, #tpu.memory_space<vmem>>, vector<8x128xf32>
    %c0_1 = arith.constant 0 : index
    %c0_2 = arith.constant 0 : index
    %1 = vector.load %arg4[%c0_1, %c0_2] : memref<128x128xbf16, #tpu.memory_space<vmem>>, vector<128x128xbf16>
    %c0_3 = arith.constant 0 : index
    %c0_4 = arith.constant 0 : index
    %2 = vector.load %arg5[%c0_3, %c0_4] : memref<1x128xf32, #tpu.memory_space<vmem>>, vector<1x128xf32>
    %3 = arith.truncf %0 : vector<8x128xf32> to vector<8x128xbf16>
    %cst = arith.constant dense<0.000000e+00> : vector<8x128xf32>
    %4 = tpu.matmul %3, %1, %cst {dimension_numbers = #tpu.dot_dimension_numbers<[1], [0], [0], [1], [0, 0, 1, 1], [], []>} : vector<8x128xbf16>, vector<128x128xbf16>, vector<8x128xf32> -> vector<8x128xf32>
    %5 = vector.broadcast %2 : vector<1x128xf32> to vector<8x128xf32>
    %6 = arith.addf %4, %5 : vector<8x128xf32>
    %cst_5 = arith.constant 0.000000e+00 : f32
    %7 = vector.broadcast %cst_5 : f32 to vector<8x128xf32>
    %8 = arith.maximumf %6, %7 : vector<8x128xf32>
    %c0_6 = arith.constant 0 : index
    %c0_7 = arith.constant 0 : index
    %9 = vector.load %arg6[%c0_6, %c0_7] : memref<128x128xbf16, #tpu.memory_space<vmem>>, vector<128x128xbf16>
    %c0_8 = arith.constant 0 : index
    %c0_9 = arith.constant 0 : index
    %10 = vector.load %arg7[%c0_8, %c0_9] : memref<1x128xf32, #tpu.memory_space<vmem>>, vector<1x128xf32>
    %11 = arith.truncf %8 : vector<8x128xf32> to vector<8x128xbf16>
    %cst_10 = arith.constant dense<0.000000e+00> : vector<8x128xf32>
    %12 = tpu.matmul %11, %9, %cst_10 {dimension_numbers = #tpu.dot_dimension_numbers<[1], [0], [0], [1], [0, 0, 1, 1], [], []>} : vector<8x128xbf16>, vector<128x128xbf16>, vector<8x128xf32> -> vector<8x128xf32>
    %13 = vector.broadcast %10 : vector<1x128xf32> to vector<8x128xf32>
    %14 = arith.addf %12, %13 : vector<8x128xf32>
    %cst_11 = arith.constant 0.000000e+00 : f32
    %15 = vector.broadcast %cst_11 : f32 to vector<8x128xf32>
    %16 = arith.maximumf %14, %15 : vector<8x128xf32>
    %c8_i32 = arith.constant 8 : i32
    %17 = arith.muli %arg0, %c8_i32 : i32
    %c0_i32 = arith.constant 0 : i32
    %18 = arith.addi %c0_i32, %17 : i32
    %c0_i32_12 = arith.constant 0 : i32
    %19 = arith.addi %18, %c0_i32_12 : i32
    %20 = arith.index_cast %19 : i32 to index
    %21 = memref.load %arg1[%20] : memref<27xi32, #tpu.memory_space<smem>>
    %c0_i32_13 = arith.constant 0 : i32
    %22 = arith.addi %c0_i32_13, %17 : i32
    %c0_i32_14 = arith.constant 0 : i32
    %23 = arith.addi %22, %c0_i32_14 : i32
    %c1_i32 = arith.constant 1 : i32
    %24 = arith.addi %23, %c1_i32 : i32
    %25 = arith.index_cast %24 : i32 to index
    %26 = memref.load %arg1[%25] : memref<27xi32, #tpu.memory_space<smem>>
    %cst_15 = arith.constant 0.000000e+00 : f32
    %27 = vector.broadcast %cst_15 : f32 to vector<1x16xf32>
    %28 = arith.subi %26, %21 : i32
    %29 = arith.addi %21, %28 : i32
    %c1_i32_16 = arith.constant 1 : i32
    %30 = scf.for %arg18 = %21 to %29 step %c1_i32_16 iter_args(%arg19 = %27) -> (vector<1x16xf32>)  : i32 {
      %c0_i32_241 = arith.constant 0 : i32
      %402 = arith.addi %c0_i32_241, %arg18 : i32
      %403 = arith.index_cast %402 : i32 to index
      %404 = memref.load %arg2[%403] : memref<48xi32, #tpu.memory_space<smem>>
      %c0_i32_242 = arith.constant 0 : i32
      %405 = arith.addi %c0_i32_242, %404 : i32
      %406 = arith.index_cast %405 : i32 to index
      %c0_243 = arith.constant 0 : index
      %407 = vector.load %arg8[%406, %c0_243] : memref<96x16xf32, #tpu.memory_space<vmem>>, vector<1x16xf32>
      %408 = arith.addf %arg19, %407 : vector<1x16xf32>
      scf.yield %408 : vector<1x16xf32>
    }
    %c0_17 = arith.constant 0 : index
    %c0_18 = arith.constant 0 : index
    %31 = vector.load %arg15[%c0_17, %c0_18] : memref<8x16xf32, #tpu.memory_space<vmem>>, vector<1x16xf32>
    tpu.vector_store %arg15[%c0_17, %c0_18], %30 {strides = array<i32>} : memref<8x16xf32, #tpu.memory_space<vmem>>, vector<1x16xf32>,
    %c9_i32 = arith.constant 9 : i32
    %32 = arith.addi %c9_i32, %17 : i32
    %c0_i32_19 = arith.constant 0 : i32
    %33 = arith.addi %32, %c0_i32_19 : i32
    %34 = arith.index_cast %33 : i32 to index
    %35 = memref.load %arg1[%34] : memref<27xi32, #tpu.memory_space<smem>>
    %c9_i32_20 = arith.constant 9 : i32
    %36 = arith.addi %c9_i32_20, %17 : i32
    %c0_i32_21 = arith.constant 0 : i32
    %37 = arith.addi %36, %c0_i32_21 : i32
    %c1_i32_22 = arith.constant 1 : i32
    %38 = arith.addi %37, %c1_i32_22 : i32
    %39 = arith.index_cast %38 : i32 to index
    %40 = memref.load %arg1[%39] : memref<27xi32, #tpu.memory_space<smem>>
    %cst_23 = arith.constant 0.000000e+00 : f32
    %41 = vector.broadcast %cst_23 : f32 to vector<1x16xf32>
    %42 = arith.subi %40, %35 : i32
    %43 = arith.addi %35, %42 : i32
    %c1_i32_24 = arith.constant 1 : i32
    %44 = scf.for %arg18 = %35 to %43 step %c1_i32_24 iter_args(%arg19 = %41) -> (vector<1x16xf32>)  : i32 {
      %c16_i32 = arith.constant 16 : i32
      %402 = arith.addi %c16_i32, %arg18 : i32
      %403 = arith.index_cast %402 : i32 to index
      %404 = memref.load %arg2[%403] : memref<48xi32, #tpu.memory_space<smem>>
      %c40_i32 = arith.constant 40 : i32
      %405 = arith.addi %c40_i32, %404 : i32
      %406 = arith.index_cast %405 : i32 to index
      %c0_241 = arith.constant 0 : index
      %407 = vector.load %arg8[%406, %c0_241] : memref<96x16xf32, #tpu.memory_space<vmem>>, vector<1x16xf32>
      %408 = arith.addf %arg19, %407 : vector<1x16xf32>
      scf.yield %408 : vector<1x16xf32>
    }
    %c0_25 = arith.constant 0 : index
    %c0_26 = arith.constant 0 : index
    %45 = vector.load %arg16[%c0_25, %c0_26] : memref<8x16xf32, #tpu.memory_space<vmem>>, vector<1x16xf32>
    tpu.vector_store %arg16[%c0_25, %c0_26], %44 {strides = array<i32>} : memref<8x16xf32, #tpu.memory_space<vmem>>, vector<1x16xf32>,
    %c18_i32 = arith.constant 18 : i32
    %46 = arith.addi %c18_i32, %17 : i32
    %c0_i32_27 = arith.constant 0 : i32
    %47 = arith.addi %46, %c0_i32_27 : i32
    %48 = arith.index_cast %47 : i32 to index
    %49 = memref.load %arg1[%48] : memref<27xi32, #tpu.memory_space<smem>>
    %c18_i32_28 = arith.constant 18 : i32
    %50 = arith.addi %c18_i32_28, %17 : i32
    %c0_i32_29 = arith.constant 0 : i32
    %51 = arith.addi %50, %c0_i32_29 : i32
    %c1_i32_30 = arith.constant 1 : i32
    %52 = arith.addi %51, %c1_i32_30 : i32
    %53 = arith.index_cast %52 : i32 to index
    %54 = memref.load %arg1[%53] : memref<27xi32, #tpu.memory_space<smem>>
    %cst_31 = arith.constant 0.000000e+00 : f32
    %55 = vector.broadcast %cst_31 : f32 to vector<1x16xf32>
    %56 = arith.subi %54, %49 : i32
    %57 = arith.addi %49, %56 : i32
    %c1_i32_32 = arith.constant 1 : i32
    %58 = scf.for %arg18 = %49 to %57 step %c1_i32_32 iter_args(%arg19 = %55) -> (vector<1x16xf32>)  : i32 {
      %c32_i32 = arith.constant 32 : i32
      %402 = arith.addi %c32_i32, %arg18 : i32
      %403 = arith.index_cast %402 : i32 to index
      %404 = memref.load %arg2[%403] : memref<48xi32, #tpu.memory_space<smem>>
      %c72_i32 = arith.constant 72 : i32
      %405 = arith.addi %c72_i32, %404 : i32
      %406 = arith.index_cast %405 : i32 to index
      %c0_241 = arith.constant 0 : index
      %407 = vector.load %arg8[%406, %c0_241] : memref<96x16xf32, #tpu.memory_space<vmem>>, vector<1x16xf32>
      %408 = arith.addf %arg19, %407 : vector<1x16xf32>
      scf.yield %408 : vector<1x16xf32>
    }
    %c0_33 = arith.constant 0 : index
    %c0_34 = arith.constant 0 : index
    %59 = vector.load %arg17[%c0_33, %c0_34] : memref<8x16xf32, #tpu.memory_space<vmem>>, vector<1x16xf32>
    tpu.vector_store %arg17[%c0_33, %c0_34], %58 {strides = array<i32>} : memref<8x16xf32, #tpu.memory_space<vmem>>, vector<1x16xf32>,
    %c0_i32_35 = arith.constant 0 : i32
    %60 = arith.addi %c0_i32_35, %17 : i32
    %c1_i32_36 = arith.constant 1 : i32
    %61 = arith.addi %60, %c1_i32_36 : i32
    %62 = arith.index_cast %61 : i32 to index
    %63 = memref.load %arg1[%62] : memref<27xi32, #tpu.memory_space<smem>>
    %c0_i32_37 = arith.constant 0 : i32
    %64 = arith.addi %c0_i32_37, %17 : i32
    %c1_i32_38 = arith.constant 1 : i32
    %65 = arith.addi %64, %c1_i32_38 : i32
    %c1_i32_39 = arith.constant 1 : i32
    %66 = arith.addi %65, %c1_i32_39 : i32
    %67 = arith.index_cast %66 : i32 to index
    %68 = memref.load %arg1[%67] : memref<27xi32, #tpu.memory_space<smem>>
    %cst_40 = arith.constant 0.000000e+00 : f32
    %69 = vector.broadcast %cst_40 : f32 to vector<1x16xf32>
    %70 = arith.subi %68, %63 : i32
    %71 = arith.addi %63, %70 : i32
    %c1_i32_41 = arith.constant 1 : i32
    %72 = scf.for %arg18 = %63 to %71 step %c1_i32_41 iter_args(%arg19 = %69) -> (vector<1x16xf32>)  : i32 {
      %c0_i32_241 = arith.constant 0 : i32
      %402 = arith.addi %c0_i32_241, %arg18 : i32
      %403 = arith.index_cast %402 : i32 to index
      %404 = memref.load %arg2[%403] : memref<48xi32, #tpu.memory_space<smem>>
      %c0_i32_242 = arith.constant 0 : i32
      %405 = arith.addi %c0_i32_242, %404 : i32
      %406 = arith.index_cast %405 : i32 to index
      %c0_243 = arith.constant 0 : index
      %407 = vector.load %arg8[%406, %c0_243] : memref<96x16xf32, #tpu.memory_space<vmem>>, vector<1x16xf32>
      %408 = arith.addf %arg19, %407 : vector<1x16xf32>
      scf.yield %408 : vector<1x16xf32>
    }
    %c1 = arith.constant 1 : index
    %c0_42 = arith.constant 0 : index
    %73 = vector.load %arg15[%c1, %c0_42] : memref<8x16xf32, #tpu.memory_space<vmem>>, vector<1x16xf32>
    tpu.vector_store %arg15[%c1, %c0_42], %72 {strides = array<i32>} : memref<8x16xf32, #tpu.memory_space<vmem>>, vector<1x16xf32>,
    %c9_i32_43 = arith.constant 9 : i32
    %74 = arith.addi %c9_i32_43, %17 : i32
    %c1_i32_44 = arith.constant 1 : i32
    %75 = arith.addi %74, %c1_i32_44 : i32
    %76 = arith.index_cast %75 : i32 to index
    %77 = memref.load %arg1[%76] : memref<27xi32, #tpu.memory_space<smem>>
    %c9_i32_45 = arith.constant 9 : i32
    %78 = arith.addi %c9_i32_45, %17 : i32
    %c1_i32_46 = arith.constant 1 : i32
    %79 = arith.addi %78, %c1_i32_46 : i32
    %c1_i32_47 = arith.constant 1 : i32
    %80 = arith.addi %79, %c1_i32_47 : i32
    %81 = arith.index_cast %80 : i32 to index
    %82 = memref.load %arg1[%81] : memref<27xi32, #tpu.memory_space<smem>>
    %cst_48 = arith.constant 0.000000e+00 : f32
    %83 = vector.broadcast %cst_48 : f32 to vector<1x16xf32>
    %84 = arith.subi %82, %77 : i32
    %85 = arith.addi %77, %84 : i32
    %c1_i32_49 = arith.constant 1 : i32
    %86 = scf.for %arg18 = %77 to %85 step %c1_i32_49 iter_args(%arg19 = %83) -> (vector<1x16xf32>)  : i32 {
      %c16_i32 = arith.constant 16 : i32
      %402 = arith.addi %c16_i32, %arg18 : i32
      %403 = arith.index_cast %402 : i32 to index
      %404 = memref.load %arg2[%403] : memref<48xi32, #tpu.memory_space<smem>>
      %c40_i32 = arith.constant 40 : i32
      %405 = arith.addi %c40_i32, %404 : i32
      %406 = arith.index_cast %405 : i32 to index
      %c0_241 = arith.constant 0 : index
      %407 = vector.load %arg8[%406, %c0_241] : memref<96x16xf32, #tpu.memory_space<vmem>>, vector<1x16xf32>
      %408 = arith.addf %arg19, %407 : vector<1x16xf32>
      scf.yield %408 : vector<1x16xf32>
    }
    %c1_50 = arith.constant 1 : index
    %c0_51 = arith.constant 0 : index
    %87 = vector.load %arg16[%c1_50, %c0_51] : memref<8x16xf32, #tpu.memory_space<vmem>>, vector<1x16xf32>
    tpu.vector_store %arg16[%c1_50, %c0_51], %86 {strides = array<i32>} : memref<8x16xf32, #tpu.memory_space<vmem>>, vector<1x16xf32>,
    %c18_i32_52 = arith.constant 18 : i32
    %88 = arith.addi %c18_i32_52, %17 : i32
    %c1_i32_53 = arith.constant 1 : i32
    %89 = arith.addi %88, %c1_i32_53 : i32
    %90 = arith.index_cast %89 : i32 to index
    %91 = memref.load %arg1[%90] : memref<27xi32, #tpu.memory_space<smem>>
    %c18_i32_54 = arith.constant 18 : i32
    %92 = arith.addi %c18_i32_54, %17 : i32
    %c1_i32_55 = arith.constant 1 : i32
    %93 = arith.addi %92, %c1_i32_55 : i32
    %c1_i32_56 = arith.constant 1 : i32
    %94 = arith.addi %93, %c1_i32_56 : i32
    %95 = arith.index_cast %94 : i32 to index
    %96 = memref.load %arg1[%95] : memref<27xi32, #tpu.memory_space<smem>>
    %cst_57 = arith.constant 0.000000e+00 : f32
    %97 = vector.broadcast %cst_57 : f32 to vector<1x16xf32>
    %98 = arith.subi %96, %91 : i32
    %99 = arith.addi %91, %98 : i32
    %c1_i32_58 = arith.constant 1 : i32
    %100 = scf.for %arg18 = %91 to %99 step %c1_i32_58 iter_args(%arg19 = %97) -> (vector<1x16xf32>)  : i32 {
      %c32_i32 = arith.constant 32 : i32
      %402 = arith.addi %c32_i32, %arg18 : i32
      %403 = arith.index_cast %402 : i32 to index
      %404 = memref.load %arg2[%403] : memref<48xi32, #tpu.memory_space<smem>>
      %c72_i32 = arith.constant 72 : i32
      %405 = arith.addi %c72_i32, %404 : i32
      %406 = arith.index_cast %405 : i32 to index
      %c0_241 = arith.constant 0 : index
      %407 = vector.load %arg8[%406, %c0_241] : memref<96x16xf32, #tpu.memory_space<vmem>>, vector<1x16xf32>
      %408 = arith.addf %arg19, %407 : vector<1x16xf32>
      scf.yield %408 : vector<1x16xf32>
    }
    %c1_59 = arith.constant 1 : index
    %c0_60 = arith.constant 0 : index
    %101 = vector.load %arg17[%c1_59, %c0_60] : memref<8x16xf32, #tpu.memory_space<vmem>>, vector<1x16xf32>
    tpu.vector_store %arg17[%c1_59, %c0_60], %100 {strides = array<i32>} : memref<8x16xf32, #tpu.memory_space<vmem>>, vector<1x16xf32>,
    %c0_i32_61 = arith.constant 0 : i32
    %102 = arith.addi %c0_i32_61, %17 : i32
    %c2_i32 = arith.constant 2 : i32
    %103 = arith.addi %102, %c2_i32 : i32
    %104 = arith.index_cast %103 : i32 to index
    %105 = memref.load %arg1[%104] : memref<27xi32, #tpu.memory_space<smem>>
    %c0_i32_62 = arith.constant 0 : i32
    %106 = arith.addi %c0_i32_62, %17 : i32
    %c2_i32_63 = arith.constant 2 : i32
    %107 = arith.addi %106, %c2_i32_63 : i32
    %c1_i32_64 = arith.constant 1 : i32
    %108 = arith.addi %107, %c1_i32_64 : i32
    %109 = arith.index_cast %108 : i32 to index
    %110 = memref.load %arg1[%109] : memref<27xi32, #tpu.memory_space<smem>>
    %cst_65 = arith.constant 0.000000e+00 : f32
    %111 = vector.broadcast %cst_65 : f32 to vector<1x16xf32>
    %112 = arith.subi %110, %105 : i32
    %113 = arith.addi %105, %112 : i32
    %c1_i32_66 = arith.constant 1 : i32
    %114 = scf.for %arg18 = %105 to %113 step %c1_i32_66 iter_args(%arg19 = %111) -> (vector<1x16xf32>)  : i32 {
      %c0_i32_241 = arith.constant 0 : i32
      %402 = arith.addi %c0_i32_241, %arg18 : i32
      %403 = arith.index_cast %402 : i32 to index
      %404 = memref.load %arg2[%403] : memref<48xi32, #tpu.memory_space<smem>>
      %c0_i32_242 = arith.constant 0 : i32
      %405 = arith.addi %c0_i32_242, %404 : i32
      %406 = arith.index_cast %405 : i32 to index
      %c0_243 = arith.constant 0 : index
      %407 = vector.load %arg8[%406, %c0_243] : memref<96x16xf32, #tpu.memory_space<vmem>>, vector<1x16xf32>
      %408 = arith.addf %arg19, %407 : vector<1x16xf32>
      scf.yield %408 : vector<1x16xf32>
    }
    %c2 = arith.constant 2 : index
    %c0_67 = arith.constant 0 : index
    %115 = vector.load %arg15[%c2, %c0_67] : memref<8x16xf32, #tpu.memory_space<vmem>>, vector<1x16xf32>
    tpu.vector_store %arg15[%c2, %c0_67], %114 {strides = array<i32>} : memref<8x16xf32, #tpu.memory_space<vmem>>, vector<1x16xf32>,
    %c9_i32_68 = arith.constant 9 : i32
    %116 = arith.addi %c9_i32_68, %17 : i32
    %c2_i32_69 = arith.constant 2 : i32
    %117 = arith.addi %116, %c2_i32_69 : i32
    %118 = arith.index_cast %117 : i32 to index
    %119 = memref.load %arg1[%118] : memref<27xi32, #tpu.memory_space<smem>>
    %c9_i32_70 = arith.constant 9 : i32
    %120 = arith.addi %c9_i32_70, %17 : i32
    %c2_i32_71 = arith.constant 2 : i32
    %121 = arith.addi %120, %c2_i32_71 : i32
    %c1_i32_72 = arith.constant 1 : i32
    %122 = arith.addi %121, %c1_i32_72 : i32
    %123 = arith.index_cast %122 : i32 to index
    %124 = memref.load %arg1[%123] : memref<27xi32, #tpu.memory_space<smem>>
    %cst_73 = arith.constant 0.000000e+00 : f32
    %125 = vector.broadcast %cst_73 : f32 to vector<1x16xf32>
    %126 = arith.subi %124, %119 : i32
    %127 = arith.addi %119, %126 : i32
    %c1_i32_74 = arith.constant 1 : i32
    %128 = scf.for %arg18 = %119 to %127 step %c1_i32_74 iter_args(%arg19 = %125) -> (vector<1x16xf32>)  : i32 {
      %c16_i32 = arith.constant 16 : i32
      %402 = arith.addi %c16_i32, %arg18 : i32
      %403 = arith.index_cast %402 : i32 to index
      %404 = memref.load %arg2[%403] : memref<48xi32, #tpu.memory_space<smem>>
      %c40_i32 = arith.constant 40 : i32
      %405 = arith.addi %c40_i32, %404 : i32
      %406 = arith.index_cast %405 : i32 to index
      %c0_241 = arith.constant 0 : index
      %407 = vector.load %arg8[%406, %c0_241] : memref<96x16xf32, #tpu.memory_space<vmem>>, vector<1x16xf32>
      %408 = arith.addf %arg19, %407 : vector<1x16xf32>
      scf.yield %408 : vector<1x16xf32>
    }
    %c2_75 = arith.constant 2 : index
    %c0_76 = arith.constant 0 : index
    %129 = vector.load %arg16[%c2_75, %c0_76] : memref<8x16xf32, #tpu.memory_space<vmem>>, vector<1x16xf32>
    tpu.vector_store %arg16[%c2_75, %c0_76], %128 {strides = array<i32>} : memref<8x16xf32, #tpu.memory_space<vmem>>, vector<1x16xf32>,
    %c18_i32_77 = arith.constant 18 : i32
    %130 = arith.addi %c18_i32_77, %17 : i32
    %c2_i32_78 = arith.constant 2 : i32
    %131 = arith.addi %130, %c2_i32_78 : i32
    %132 = arith.index_cast %131 : i32 to index
    %133 = memref.load %arg1[%132] : memref<27xi32, #tpu.memory_space<smem>>
    %c18_i32_79 = arith.constant 18 : i32
    %134 = arith.addi %c18_i32_79, %17 : i32
    %c2_i32_80 = arith.constant 2 : i32
    %135 = arith.addi %134, %c2_i32_80 : i32
    %c1_i32_81 = arith.constant 1 : i32
    %136 = arith.addi %135, %c1_i32_81 : i32
    %137 = arith.index_cast %136 : i32 to index
    %138 = memref.load %arg1[%137] : memref<27xi32, #tpu.memory_space<smem>>
    %cst_82 = arith.constant 0.000000e+00 : f32
    %139 = vector.broadcast %cst_82 : f32 to vector<1x16xf32>
    %140 = arith.subi %138, %133 : i32
    %141 = arith.addi %133, %140 : i32
    %c1_i32_83 = arith.constant 1 : i32
    %142 = scf.for %arg18 = %133 to %141 step %c1_i32_83 iter_args(%arg19 = %139) -> (vector<1x16xf32>)  : i32 {
      %c32_i32 = arith.constant 32 : i32
      %402 = arith.addi %c32_i32, %arg18 : i32
      %403 = arith.index_cast %402 : i32 to index
      %404 = memref.load %arg2[%403] : memref<48xi32, #tpu.memory_space<smem>>
      %c72_i32 = arith.constant 72 : i32
      %405 = arith.addi %c72_i32, %404 : i32
      %406 = arith.index_cast %405 : i32 to index
      %c0_241 = arith.constant 0 : index
      %407 = vector.load %arg8[%406, %c0_241] : memref<96x16xf32, #tpu.memory_space<vmem>>, vector<1x16xf32>
      %408 = arith.addf %arg19, %407 : vector<1x16xf32>
      scf.yield %408 : vector<1x16xf32>
    }
    %c2_84 = arith.constant 2 : index
    %c0_85 = arith.constant 0 : index
    %143 = vector.load %arg17[%c2_84, %c0_85] : memref<8x16xf32, #tpu.memory_space<vmem>>, vector<1x16xf32>
    tpu.vector_store %arg17[%c2_84, %c0_85], %142 {strides = array<i32>} : memref<8x16xf32, #tpu.memory_space<vmem>>, vector<1x16xf32>,
    %c0_i32_86 = arith.constant 0 : i32
    %144 = arith.addi %c0_i32_86, %17 : i32
    %c3_i32 = arith.constant 3 : i32
    %145 = arith.addi %144, %c3_i32 : i32
    %146 = arith.index_cast %145 : i32 to index
    %147 = memref.load %arg1[%146] : memref<27xi32, #tpu.memory_space<smem>>
    %c0_i32_87 = arith.constant 0 : i32
    %148 = arith.addi %c0_i32_87, %17 : i32
    %c3_i32_88 = arith.constant 3 : i32
    %149 = arith.addi %148, %c3_i32_88 : i32
    %c1_i32_89 = arith.constant 1 : i32
    %150 = arith.addi %149, %c1_i32_89 : i32
    %151 = arith.index_cast %150 : i32 to index
    %152 = memref.load %arg1[%151] : memref<27xi32, #tpu.memory_space<smem>>
    %cst_90 = arith.constant 0.000000e+00 : f32
    %153 = vector.broadcast %cst_90 : f32 to vector<1x16xf32>
    %154 = arith.subi %152, %147 : i32
    %155 = arith.addi %147, %154 : i32
    %c1_i32_91 = arith.constant 1 : i32
    %156 = scf.for %arg18 = %147 to %155 step %c1_i32_91 iter_args(%arg19 = %153) -> (vector<1x16xf32>)  : i32 {
      %c0_i32_241 = arith.constant 0 : i32
      %402 = arith.addi %c0_i32_241, %arg18 : i32
      %403 = arith.index_cast %402 : i32 to index
      %404 = memref.load %arg2[%403] : memref<48xi32, #tpu.memory_space<smem>>
      %c0_i32_242 = arith.constant 0 : i32
      %405 = arith.addi %c0_i32_242, %404 : i32
      %406 = arith.index_cast %405 : i32 to index
      %c0_243 = arith.constant 0 : index
      %407 = vector.load %arg8[%406, %c0_243] : memref<96x16xf32, #tpu.memory_space<vmem>>, vector<1x16xf32>
      %408 = arith.addf %arg19, %407 : vector<1x16xf32>
      scf.yield %408 : vector<1x16xf32>
    }
    %c3 = arith.constant 3 : index
    %c0_92 = arith.constant 0 : index
    %157 = vector.load %arg15[%c3, %c0_92] : memref<8x16xf32, #tpu.memory_space<vmem>>, vector<1x16xf32>
    tpu.vector_store %arg15[%c3, %c0_92], %156 {strides = array<i32>} : memref<8x16xf32, #tpu.memory_space<vmem>>, vector<1x16xf32>,
    %c9_i32_93 = arith.constant 9 : i32
    %158 = arith.addi %c9_i32_93, %17 : i32
    %c3_i32_94 = arith.constant 3 : i32
    %159 = arith.addi %158, %c3_i32_94 : i32
    %160 = arith.index_cast %159 : i32 to index
    %161 = memref.load %arg1[%160] : memref<27xi32, #tpu.memory_space<smem>>
    %c9_i32_95 = arith.constant 9 : i32
    %162 = arith.addi %c9_i32_95, %17 : i32
    %c3_i32_96 = arith.constant 3 : i32
    %163 = arith.addi %162, %c3_i32_96 : i32
    %c1_i32_97 = arith.constant 1 : i32
    %164 = arith.addi %163, %c1_i32_97 : i32
    %165 = arith.index_cast %164 : i32 to index
    %166 = memref.load %arg1[%165] : memref<27xi32, #tpu.memory_space<smem>>
    %cst_98 = arith.constant 0.000000e+00 : f32
    %167 = vector.broadcast %cst_98 : f32 to vector<1x16xf32>
    %168 = arith.subi %166, %161 : i32
    %169 = arith.addi %161, %168 : i32
    %c1_i32_99 = arith.constant 1 : i32
    %170 = scf.for %arg18 = %161 to %169 step %c1_i32_99 iter_args(%arg19 = %167) -> (vector<1x16xf32>)  : i32 {
      %c16_i32 = arith.constant 16 : i32
      %402 = arith.addi %c16_i32, %arg18 : i32
      %403 = arith.index_cast %402 : i32 to index
      %404 = memref.load %arg2[%403] : memref<48xi32, #tpu.memory_space<smem>>
      %c40_i32 = arith.constant 40 : i32
      %405 = arith.addi %c40_i32, %404 : i32
      %406 = arith.index_cast %405 : i32 to index
      %c0_241 = arith.constant 0 : index
      %407 = vector.load %arg8[%406, %c0_241] : memref<96x16xf32, #tpu.memory_space<vmem>>, vector<1x16xf32>
      %408 = arith.addf %arg19, %407 : vector<1x16xf32>
      scf.yield %408 : vector<1x16xf32>
    }
    %c3_100 = arith.constant 3 : index
    %c0_101 = arith.constant 0 : index
    %171 = vector.load %arg16[%c3_100, %c0_101] : memref<8x16xf32, #tpu.memory_space<vmem>>, vector<1x16xf32>
    tpu.vector_store %arg16[%c3_100, %c0_101], %170 {strides = array<i32>} : memref<8x16xf32, #tpu.memory_space<vmem>>, vector<1x16xf32>,
    %c18_i32_102 = arith.constant 18 : i32
    %172 = arith.addi %c18_i32_102, %17 : i32
    %c3_i32_103 = arith.constant 3 : i32
    %173 = arith.addi %172, %c3_i32_103 : i32
    %174 = arith.index_cast %173 : i32 to index
    %175 = memref.load %arg1[%174] : memref<27xi32, #tpu.memory_space<smem>>
    %c18_i32_104 = arith.constant 18 : i32
    %176 = arith.addi %c18_i32_104, %17 : i32
    %c3_i32_105 = arith.constant 3 : i32
    %177 = arith.addi %176, %c3_i32_105 : i32
    %c1_i32_106 = arith.constant 1 : i32
    %178 = arith.addi %177, %c1_i32_106 : i32
    %179 = arith.index_cast %178 : i32 to index
    %180 = memref.load %arg1[%179] : memref<27xi32, #tpu.memory_space<smem>>
    %cst_107 = arith.constant 0.000000e+00 : f32
    %181 = vector.broadcast %cst_107 : f32 to vector<1x16xf32>
    %182 = arith.subi %180, %175 : i32
    %183 = arith.addi %175, %182 : i32
    %c1_i32_108 = arith.constant 1 : i32
    %184 = scf.for %arg18 = %175 to %183 step %c1_i32_108 iter_args(%arg19 = %181) -> (vector<1x16xf32>)  : i32 {
      %c32_i32 = arith.constant 32 : i32
      %402 = arith.addi %c32_i32, %arg18 : i32
      %403 = arith.index_cast %402 : i32 to index
      %404 = memref.load %arg2[%403] : memref<48xi32, #tpu.memory_space<smem>>
      %c72_i32 = arith.constant 72 : i32
      %405 = arith.addi %c72_i32, %404 : i32
      %406 = arith.index_cast %405 : i32 to index
      %c0_241 = arith.constant 0 : index
      %407 = vector.load %arg8[%406, %c0_241] : memref<96x16xf32, #tpu.memory_space<vmem>>, vector<1x16xf32>
      %408 = arith.addf %arg19, %407 : vector<1x16xf32>
      scf.yield %408 : vector<1x16xf32>
    }
    %c3_109 = arith.constant 3 : index
    %c0_110 = arith.constant 0 : index
    %185 = vector.load %arg17[%c3_109, %c0_110] : memref<8x16xf32, #tpu.memory_space<vmem>>, vector<1x16xf32>
    tpu.vector_store %arg17[%c3_109, %c0_110], %184 {strides = array<i32>} : memref<8x16xf32, #tpu.memory_space<vmem>>, vector<1x16xf32>,
    %c0_i32_111 = arith.constant 0 : i32
    %186 = arith.addi %c0_i32_111, %17 : i32
    %c4_i32 = arith.constant 4 : i32
    %187 = arith.addi %186, %c4_i32 : i32
    %188 = arith.index_cast %187 : i32 to index
    %189 = memref.load %arg1[%188] : memref<27xi32, #tpu.memory_space<smem>>
    %c0_i32_112 = arith.constant 0 : i32
    %190 = arith.addi %c0_i32_112, %17 : i32
    %c4_i32_113 = arith.constant 4 : i32
    %191 = arith.addi %190, %c4_i32_113 : i32
    %c1_i32_114 = arith.constant 1 : i32
    %192 = arith.addi %191, %c1_i32_114 : i32
    %193 = arith.index_cast %192 : i32 to index
    %194 = memref.load %arg1[%193] : memref<27xi32, #tpu.memory_space<smem>>
    %cst_115 = arith.constant 0.000000e+00 : f32
    %195 = vector.broadcast %cst_115 : f32 to vector<1x16xf32>
    %196 = arith.subi %194, %189 : i32
    %197 = arith.addi %189, %196 : i32
    %c1_i32_116 = arith.constant 1 : i32
    %198 = scf.for %arg18 = %189 to %197 step %c1_i32_116 iter_args(%arg19 = %195) -> (vector<1x16xf32>)  : i32 {
      %c0_i32_241 = arith.constant 0 : i32
      %402 = arith.addi %c0_i32_241, %arg18 : i32
      %403 = arith.index_cast %402 : i32 to index
      %404 = memref.load %arg2[%403] : memref<48xi32, #tpu.memory_space<smem>>
      %c0_i32_242 = arith.constant 0 : i32
      %405 = arith.addi %c0_i32_242, %404 : i32
      %406 = arith.index_cast %405 : i32 to index
      %c0_243 = arith.constant 0 : index
      %407 = vector.load %arg8[%406, %c0_243] : memref<96x16xf32, #tpu.memory_space<vmem>>, vector<1x16xf32>
      %408 = arith.addf %arg19, %407 : vector<1x16xf32>
      scf.yield %408 : vector<1x16xf32>
    }
    %c4 = arith.constant 4 : index
    %c0_117 = arith.constant 0 : index
    %199 = vector.load %arg15[%c4, %c0_117] : memref<8x16xf32, #tpu.memory_space<vmem>>, vector<1x16xf32>
    tpu.vector_store %arg15[%c4, %c0_117], %198 {strides = array<i32>} : memref<8x16xf32, #tpu.memory_space<vmem>>, vector<1x16xf32>,
    %c9_i32_118 = arith.constant 9 : i32
    %200 = arith.addi %c9_i32_118, %17 : i32
    %c4_i32_119 = arith.constant 4 : i32
    %201 = arith.addi %200, %c4_i32_119 : i32
    %202 = arith.index_cast %201 : i32 to index
    %203 = memref.load %arg1[%202] : memref<27xi32, #tpu.memory_space<smem>>
    %c9_i32_120 = arith.constant 9 : i32
    %204 = arith.addi %c9_i32_120, %17 : i32
    %c4_i32_121 = arith.constant 4 : i32
    %205 = arith.addi %204, %c4_i32_121 : i32
    %c1_i32_122 = arith.constant 1 : i32
    %206 = arith.addi %205, %c1_i32_122 : i32
    %207 = arith.index_cast %206 : i32 to index
    %208 = memref.load %arg1[%207] : memref<27xi32, #tpu.memory_space<smem>>
    %cst_123 = arith.constant 0.000000e+00 : f32
    %209 = vector.broadcast %cst_123 : f32 to vector<1x16xf32>
    %210 = arith.subi %208, %203 : i32
    %211 = arith.addi %203, %210 : i32
    %c1_i32_124 = arith.constant 1 : i32
    %212 = scf.for %arg18 = %203 to %211 step %c1_i32_124 iter_args(%arg19 = %209) -> (vector<1x16xf32>)  : i32 {
      %c16_i32 = arith.constant 16 : i32
      %402 = arith.addi %c16_i32, %arg18 : i32
      %403 = arith.index_cast %402 : i32 to index
      %404 = memref.load %arg2[%403] : memref<48xi32, #tpu.memory_space<smem>>
      %c40_i32 = arith.constant 40 : i32
      %405 = arith.addi %c40_i32, %404 : i32
      %406 = arith.index_cast %405 : i32 to index
      %c0_241 = arith.constant 0 : index
      %407 = vector.load %arg8[%406, %c0_241] : memref<96x16xf32, #tpu.memory_space<vmem>>, vector<1x16xf32>
      %408 = arith.addf %arg19, %407 : vector<1x16xf32>
      scf.yield %408 : vector<1x16xf32>
    }
    %c4_125 = arith.constant 4 : index
    %c0_126 = arith.constant 0 : index
    %213 = vector.load %arg16[%c4_125, %c0_126] : memref<8x16xf32, #tpu.memory_space<vmem>>, vector<1x16xf32>
    tpu.vector_store %arg16[%c4_125, %c0_126], %212 {strides = array<i32>} : memref<8x16xf32, #tpu.memory_space<vmem>>, vector<1x16xf32>,
    %c18_i32_127 = arith.constant 18 : i32
    %214 = arith.addi %c18_i32_127, %17 : i32
    %c4_i32_128 = arith.constant 4 : i32
    %215 = arith.addi %214, %c4_i32_128 : i32
    %216 = arith.index_cast %215 : i32 to index
    %217 = memref.load %arg1[%216] : memref<27xi32, #tpu.memory_space<smem>>
    %c18_i32_129 = arith.constant 18 : i32
    %218 = arith.addi %c18_i32_129, %17 : i32
    %c4_i32_130 = arith.constant 4 : i32
    %219 = arith.addi %218, %c4_i32_130 : i32
    %c1_i32_131 = arith.constant 1 : i32
    %220 = arith.addi %219, %c1_i32_131 : i32
    %221 = arith.index_cast %220 : i32 to index
    %222 = memref.load %arg1[%221] : memref<27xi32, #tpu.memory_space<smem>>
    %cst_132 = arith.constant 0.000000e+00 : f32
    %223 = vector.broadcast %cst_132 : f32 to vector<1x16xf32>
    %224 = arith.subi %222, %217 : i32
    %225 = arith.addi %217, %224 : i32
    %c1_i32_133 = arith.constant 1 : i32
    %226 = scf.for %arg18 = %217 to %225 step %c1_i32_133 iter_args(%arg19 = %223) -> (vector<1x16xf32>)  : i32 {
      %c32_i32 = arith.constant 32 : i32
      %402 = arith.addi %c32_i32, %arg18 : i32
      %403 = arith.index_cast %402 : i32 to index
      %404 = memref.load %arg2[%403] : memref<48xi32, #tpu.memory_space<smem>>
      %c72_i32 = arith.constant 72 : i32
      %405 = arith.addi %c72_i32, %404 : i32
      %406 = arith.index_cast %405 : i32 to index
      %c0_241 = arith.constant 0 : index
      %407 = vector.load %arg8[%406, %c0_241] : memref<96x16xf32, #tpu.memory_space<vmem>>, vector<1x16xf32>
      %408 = arith.addf %arg19, %407 : vector<1x16xf32>
      scf.yield %408 : vector<1x16xf32>
    }
    %c4_134 = arith.constant 4 : index
    %c0_135 = arith.constant 0 : index
    %227 = vector.load %arg17[%c4_134, %c0_135] : memref<8x16xf32, #tpu.memory_space<vmem>>, vector<1x16xf32>
    tpu.vector_store %arg17[%c4_134, %c0_135], %226 {strides = array<i32>} : memref<8x16xf32, #tpu.memory_space<vmem>>, vector<1x16xf32>,
    %c0_i32_136 = arith.constant 0 : i32
    %228 = arith.addi %c0_i32_136, %17 : i32
    %c5_i32 = arith.constant 5 : i32
    %229 = arith.addi %228, %c5_i32 : i32
    %230 = arith.index_cast %229 : i32 to index
    %231 = memref.load %arg1[%230] : memref<27xi32, #tpu.memory_space<smem>>
    %c0_i32_137 = arith.constant 0 : i32
    %232 = arith.addi %c0_i32_137, %17 : i32
    %c5_i32_138 = arith.constant 5 : i32
    %233 = arith.addi %232, %c5_i32_138 : i32
    %c1_i32_139 = arith.constant 1 : i32
    %234 = arith.addi %233, %c1_i32_139 : i32
    %235 = arith.index_cast %234 : i32 to index
    %236 = memref.load %arg1[%235] : memref<27xi32, #tpu.memory_space<smem>>
    %cst_140 = arith.constant 0.000000e+00 : f32
    %237 = vector.broadcast %cst_140 : f32 to vector<1x16xf32>
    %238 = arith.subi %236, %231 : i32
    %239 = arith.addi %231, %238 : i32
    %c1_i32_141 = arith.constant 1 : i32
    %240 = scf.for %arg18 = %231 to %239 step %c1_i32_141 iter_args(%arg19 = %237) -> (vector<1x16xf32>)  : i32 {
      %c0_i32_241 = arith.constant 0 : i32
      %402 = arith.addi %c0_i32_241, %arg18 : i32
      %403 = arith.index_cast %402 : i32 to index
      %404 = memref.load %arg2[%403] : memref<48xi32, #tpu.memory_space<smem>>
      %c0_i32_242 = arith.constant 0 : i32
      %405 = arith.addi %c0_i32_242, %404 : i32
      %406 = arith.index_cast %405 : i32 to index
      %c0_243 = arith.constant 0 : index
      %407 = vector.load %arg8[%406, %c0_243] : memref<96x16xf32, #tpu.memory_space<vmem>>, vector<1x16xf32>
      %408 = arith.addf %arg19, %407 : vector<1x16xf32>
      scf.yield %408 : vector<1x16xf32>
    }
    %c5 = arith.constant 5 : index
    %c0_142 = arith.constant 0 : index
    %241 = vector.load %arg15[%c5, %c0_142] : memref<8x16xf32, #tpu.memory_space<vmem>>, vector<1x16xf32>
    tpu.vector_store %arg15[%c5, %c0_142], %240 {strides = array<i32>} : memref<8x16xf32, #tpu.memory_space<vmem>>, vector<1x16xf32>,
    %c9_i32_143 = arith.constant 9 : i32
    %242 = arith.addi %c9_i32_143, %17 : i32
    %c5_i32_144 = arith.constant 5 : i32
    %243 = arith.addi %242, %c5_i32_144 : i32
    %244 = arith.index_cast %243 : i32 to index
    %245 = memref.load %arg1[%244] : memref<27xi32, #tpu.memory_space<smem>>
    %c9_i32_145 = arith.constant 9 : i32
    %246 = arith.addi %c9_i32_145, %17 : i32
    %c5_i32_146 = arith.constant 5 : i32
    %247 = arith.addi %246, %c5_i32_146 : i32
    %c1_i32_147 = arith.constant 1 : i32
    %248 = arith.addi %247, %c1_i32_147 : i32
    %249 = arith.index_cast %248 : i32 to index
    %250 = memref.load %arg1[%249] : memref<27xi32, #tpu.memory_space<smem>>
    %cst_148 = arith.constant 0.000000e+00 : f32
    %251 = vector.broadcast %cst_148 : f32 to vector<1x16xf32>
    %252 = arith.subi %250, %245 : i32
    %253 = arith.addi %245, %252 : i32
    %c1_i32_149 = arith.constant 1 : i32
    %254 = scf.for %arg18 = %245 to %253 step %c1_i32_149 iter_args(%arg19 = %251) -> (vector<1x16xf32>)  : i32 {
      %c16_i32 = arith.constant 16 : i32
      %402 = arith.addi %c16_i32, %arg18 : i32
      %403 = arith.index_cast %402 : i32 to index
      %404 = memref.load %arg2[%403] : memref<48xi32, #tpu.memory_space<smem>>
      %c40_i32 = arith.constant 40 : i32
      %405 = arith.addi %c40_i32, %404 : i32
      %406 = arith.index_cast %405 : i32 to index
      %c0_241 = arith.constant 0 : index
      %407 = vector.load %arg8[%406, %c0_241] : memref<96x16xf32, #tpu.memory_space<vmem>>, vector<1x16xf32>
      %408 = arith.addf %arg19, %407 : vector<1x16xf32>
      scf.yield %408 : vector<1x16xf32>
    }
    %c5_150 = arith.constant 5 : index
    %c0_151 = arith.constant 0 : index
    %255 = vector.load %arg16[%c5_150, %c0_151] : memref<8x16xf32, #tpu.memory_space<vmem>>, vector<1x16xf32>
    tpu.vector_store %arg16[%c5_150, %c0_151], %254 {strides = array<i32>} : memref<8x16xf32, #tpu.memory_space<vmem>>, vector<1x16xf32>,
    %c18_i32_152 = arith.constant 18 : i32
    %256 = arith.addi %c18_i32_152, %17 : i32
    %c5_i32_153 = arith.constant 5 : i32
    %257 = arith.addi %256, %c5_i32_153 : i32
    %258 = arith.index_cast %257 : i32 to index
    %259 = memref.load %arg1[%258] : memref<27xi32, #tpu.memory_space<smem>>
    %c18_i32_154 = arith.constant 18 : i32
    %260 = arith.addi %c18_i32_154, %17 : i32
    %c5_i32_155 = arith.constant 5 : i32
    %261 = arith.addi %260, %c5_i32_155 : i32
    %c1_i32_156 = arith.constant 1 : i32
    %262 = arith.addi %261, %c1_i32_156 : i32
    %263 = arith.index_cast %262 : i32 to index
    %264 = memref.load %arg1[%263] : memref<27xi32, #tpu.memory_space<smem>>
    %cst_157 = arith.constant 0.000000e+00 : f32
    %265 = vector.broadcast %cst_157 : f32 to vector<1x16xf32>
    %266 = arith.subi %264, %259 : i32
    %267 = arith.addi %259, %266 : i32
    %c1_i32_158 = arith.constant 1 : i32
    %268 = scf.for %arg18 = %259 to %267 step %c1_i32_158 iter_args(%arg19 = %265) -> (vector<1x16xf32>)  : i32 {
      %c32_i32 = arith.constant 32 : i32
      %402 = arith.addi %c32_i32, %arg18 : i32
      %403 = arith.index_cast %402 : i32 to index
      %404 = memref.load %arg2[%403] : memref<48xi32, #tpu.memory_space<smem>>
      %c72_i32 = arith.constant 72 : i32
      %405 = arith.addi %c72_i32, %404 : i32
      %406 = arith.index_cast %405 : i32 to index
      %c0_241 = arith.constant 0 : index
      %407 = vector.load %arg8[%406, %c0_241] : memref<96x16xf32, #tpu.memory_space<vmem>>, vector<1x16xf32>
      %408 = arith.addf %arg19, %407 : vector<1x16xf32>
      scf.yield %408 : vector<1x16xf32>
    }
    %c5_159 = arith.constant 5 : index
    %c0_160 = arith.constant 0 : index
    %269 = vector.load %arg17[%c5_159, %c0_160] : memref<8x16xf32, #tpu.memory_space<vmem>>, vector<1x16xf32>
    tpu.vector_store %arg17[%c5_159, %c0_160], %268 {strides = array<i32>} : memref<8x16xf32, #tpu.memory_space<vmem>>, vector<1x16xf32>,
    %c0_i32_161 = arith.constant 0 : i32
    %270 = arith.addi %c0_i32_161, %17 : i32
    %c6_i32 = arith.constant 6 : i32
    %271 = arith.addi %270, %c6_i32 : i32
    %272 = arith.index_cast %271 : i32 to index
    %273 = memref.load %arg1[%272] : memref<27xi32, #tpu.memory_space<smem>>
    %c0_i32_162 = arith.constant 0 : i32
    %274 = arith.addi %c0_i32_162, %17 : i32
    %c6_i32_163 = arith.constant 6 : i32
    %275 = arith.addi %274, %c6_i32_163 : i32
    %c1_i32_164 = arith.constant 1 : i32
    %276 = arith.addi %275, %c1_i32_164 : i32
    %277 = arith.index_cast %276 : i32 to index
    %278 = memref.load %arg1[%277] : memref<27xi32, #tpu.memory_space<smem>>
    %cst_165 = arith.constant 0.000000e+00 : f32
    %279 = vector.broadcast %cst_165 : f32 to vector<1x16xf32>
    %280 = arith.subi %278, %273 : i32
    %281 = arith.addi %273, %280 : i32
    %c1_i32_166 = arith.constant 1 : i32
    %282 = scf.for %arg18 = %273 to %281 step %c1_i32_166 iter_args(%arg19 = %279) -> (vector<1x16xf32>)  : i32 {
      %c0_i32_241 = arith.constant 0 : i32
      %402 = arith.addi %c0_i32_241, %arg18 : i32
      %403 = arith.index_cast %402 : i32 to index
      %404 = memref.load %arg2[%403] : memref<48xi32, #tpu.memory_space<smem>>
      %c0_i32_242 = arith.constant 0 : i32
      %405 = arith.addi %c0_i32_242, %404 : i32
      %406 = arith.index_cast %405 : i32 to index
      %c0_243 = arith.constant 0 : index
      %407 = vector.load %arg8[%406, %c0_243] : memref<96x16xf32, #tpu.memory_space<vmem>>, vector<1x16xf32>
      %408 = arith.addf %arg19, %407 : vector<1x16xf32>
      scf.yield %408 : vector<1x16xf32>
    }
    %c6 = arith.constant 6 : index
    %c0_167 = arith.constant 0 : index
    %283 = vector.load %arg15[%c6, %c0_167] : memref<8x16xf32, #tpu.memory_space<vmem>>, vector<1x16xf32>
    tpu.vector_store %arg15[%c6, %c0_167], %282 {strides = array<i32>} : memref<8x16xf32, #tpu.memory_space<vmem>>, vector<1x16xf32>,
    %c9_i32_168 = arith.constant 9 : i32
    %284 = arith.addi %c9_i32_168, %17 : i32
    %c6_i32_169 = arith.constant 6 : i32
    %285 = arith.addi %284, %c6_i32_169 : i32
    %286 = arith.index_cast %285 : i32 to index
    %287 = memref.load %arg1[%286] : memref<27xi32, #tpu.memory_space<smem>>
    %c9_i32_170 = arith.constant 9 : i32
    %288 = arith.addi %c9_i32_170, %17 : i32
    %c6_i32_171 = arith.constant 6 : i32
    %289 = arith.addi %288, %c6_i32_171 : i32
    %c1_i32_172 = arith.constant 1 : i32
    %290 = arith.addi %289, %c1_i32_172 : i32
    %291 = arith.index_cast %290 : i32 to index
    %292 = memref.load %arg1[%291] : memref<27xi32, #tpu.memory_space<smem>>
    %cst_173 = arith.constant 0.000000e+00 : f32
    %293 = vector.broadcast %cst_173 : f32 to vector<1x16xf32>
    %294 = arith.subi %292, %287 : i32
    %295 = arith.addi %287, %294 : i32
    %c1_i32_174 = arith.constant 1 : i32
    %296 = scf.for %arg18 = %287 to %295 step %c1_i32_174 iter_args(%arg19 = %293) -> (vector<1x16xf32>)  : i32 {
      %c16_i32 = arith.constant 16 : i32
      %402 = arith.addi %c16_i32, %arg18 : i32
      %403 = arith.index_cast %402 : i32 to index
      %404 = memref.load %arg2[%403] : memref<48xi32, #tpu.memory_space<smem>>
      %c40_i32 = arith.constant 40 : i32
      %405 = arith.addi %c40_i32, %404 : i32
      %406 = arith.index_cast %405 : i32 to index
      %c0_241 = arith.constant 0 : index
      %407 = vector.load %arg8[%406, %c0_241] : memref<96x16xf32, #tpu.memory_space<vmem>>, vector<1x16xf32>
      %408 = arith.addf %arg19, %407 : vector<1x16xf32>
      scf.yield %408 : vector<1x16xf32>
    }
    %c6_175 = arith.constant 6 : index
    %c0_176 = arith.constant 0 : index
    %297 = vector.load %arg16[%c6_175, %c0_176] : memref<8x16xf32, #tpu.memory_space<vmem>>, vector<1x16xf32>
    tpu.vector_store %arg16[%c6_175, %c0_176], %296 {strides = array<i32>} : memref<8x16xf32, #tpu.memory_space<vmem>>, vector<1x16xf32>,
    %c18_i32_177 = arith.constant 18 : i32
    %298 = arith.addi %c18_i32_177, %17 : i32
    %c6_i32_178 = arith.constant 6 : i32
    %299 = arith.addi %298, %c6_i32_178 : i32
    %300 = arith.index_cast %299 : i32 to index
    %301 = memref.load %arg1[%300] : memref<27xi32, #tpu.memory_space<smem>>
    %c18_i32_179 = arith.constant 18 : i32
    %302 = arith.addi %c18_i32_179, %17 : i32
    %c6_i32_180 = arith.constant 6 : i32
    %303 = arith.addi %302, %c6_i32_180 : i32
    %c1_i32_181 = arith.constant 1 : i32
    %304 = arith.addi %303, %c1_i32_181 : i32
    %305 = arith.index_cast %304 : i32 to index
    %306 = memref.load %arg1[%305] : memref<27xi32, #tpu.memory_space<smem>>
    %cst_182 = arith.constant 0.000000e+00 : f32
    %307 = vector.broadcast %cst_182 : f32 to vector<1x16xf32>
    %308 = arith.subi %306, %301 : i32
    %309 = arith.addi %301, %308 : i32
    %c1_i32_183 = arith.constant 1 : i32
    %310 = scf.for %arg18 = %301 to %309 step %c1_i32_183 iter_args(%arg19 = %307) -> (vector<1x16xf32>)  : i32 {
      %c32_i32 = arith.constant 32 : i32
      %402 = arith.addi %c32_i32, %arg18 : i32
      %403 = arith.index_cast %402 : i32 to index
      %404 = memref.load %arg2[%403] : memref<48xi32, #tpu.memory_space<smem>>
      %c72_i32 = arith.constant 72 : i32
      %405 = arith.addi %c72_i32, %404 : i32
      %406 = arith.index_cast %405 : i32 to index
      %c0_241 = arith.constant 0 : index
      %407 = vector.load %arg8[%406, %c0_241] : memref<96x16xf32, #tpu.memory_space<vmem>>, vector<1x16xf32>
      %408 = arith.addf %arg19, %407 : vector<1x16xf32>
      scf.yield %408 : vector<1x16xf32>
    }
    %c6_184 = arith.constant 6 : index
    %c0_185 = arith.constant 0 : index
    %311 = vector.load %arg17[%c6_184, %c0_185] : memref<8x16xf32, #tpu.memory_space<vmem>>, vector<1x16xf32>
    tpu.vector_store %arg17[%c6_184, %c0_185], %310 {strides = array<i32>} : memref<8x16xf32, #tpu.memory_space<vmem>>, vector<1x16xf32>,
    %c0_i32_186 = arith.constant 0 : i32
    %312 = arith.addi %c0_i32_186, %17 : i32
    %c7_i32 = arith.constant 7 : i32
    %313 = arith.addi %312, %c7_i32 : i32
    %314 = arith.index_cast %313 : i32 to index
    %315 = memref.load %arg1[%314] : memref<27xi32, #tpu.memory_space<smem>>
    %c0_i32_187 = arith.constant 0 : i32
    %316 = arith.addi %c0_i32_187, %17 : i32
    %c7_i32_188 = arith.constant 7 : i32
    %317 = arith.addi %316, %c7_i32_188 : i32
    %c1_i32_189 = arith.constant 1 : i32
    %318 = arith.addi %317, %c1_i32_189 : i32
    %319 = arith.index_cast %318 : i32 to index
    %320 = memref.load %arg1[%319] : memref<27xi32, #tpu.memory_space<smem>>
    %cst_190 = arith.constant 0.000000e+00 : f32
    %321 = vector.broadcast %cst_190 : f32 to vector<1x16xf32>
    %322 = arith.subi %320, %315 : i32
    %323 = arith.addi %315, %322 : i32
    %c1_i32_191 = arith.constant 1 : i32
    %324 = scf.for %arg18 = %315 to %323 step %c1_i32_191 iter_args(%arg19 = %321) -> (vector<1x16xf32>)  : i32 {
      %c0_i32_241 = arith.constant 0 : i32
      %402 = arith.addi %c0_i32_241, %arg18 : i32
      %403 = arith.index_cast %402 : i32 to index
      %404 = memref.load %arg2[%403] : memref<48xi32, #tpu.memory_space<smem>>
      %c0_i32_242 = arith.constant 0 : i32
      %405 = arith.addi %c0_i32_242, %404 : i32
      %406 = arith.index_cast %405 : i32 to index
      %c0_243 = arith.constant 0 : index
      %407 = vector.load %arg8[%406, %c0_243] : memref<96x16xf32, #tpu.memory_space<vmem>>, vector<1x16xf32>
      %408 = arith.addf %arg19, %407 : vector<1x16xf32>
      scf.yield %408 : vector<1x16xf32>
    }
    %c7 = arith.constant 7 : index
    %c0_192 = arith.constant 0 : index
    %325 = vector.load %arg15[%c7, %c0_192] : memref<8x16xf32, #tpu.memory_space<vmem>>, vector<1x16xf32>
    tpu.vector_store %arg15[%c7, %c0_192], %324 {strides = array<i32>} : memref<8x16xf32, #tpu.memory_space<vmem>>, vector<1x16xf32>,
    %c9_i32_193 = arith.constant 9 : i32
    %326 = arith.addi %c9_i32_193, %17 : i32
    %c7_i32_194 = arith.constant 7 : i32
    %327 = arith.addi %326, %c7_i32_194 : i32
    %328 = arith.index_cast %327 : i32 to index
    %329 = memref.load %arg1[%328] : memref<27xi32, #tpu.memory_space<smem>>
    %c9_i32_195 = arith.constant 9 : i32
    %330 = arith.addi %c9_i32_195, %17 : i32
    %c7_i32_196 = arith.constant 7 : i32
    %331 = arith.addi %330, %c7_i32_196 : i32
    %c1_i32_197 = arith.constant 1 : i32
    %332 = arith.addi %331, %c1_i32_197 : i32
    %333 = arith.index_cast %332 : i32 to index
    %334 = memref.load %arg1[%333] : memref<27xi32, #tpu.memory_space<smem>>
    %cst_198 = arith.constant 0.000000e+00 : f32
    %335 = vector.broadcast %cst_198 : f32 to vector<1x16xf32>
    %336 = arith.subi %334, %329 : i32
    %337 = arith.addi %329, %336 : i32
    %c1_i32_199 = arith.constant 1 : i32
    %338 = scf.for %arg18 = %329 to %337 step %c1_i32_199 iter_args(%arg19 = %335) -> (vector<1x16xf32>)  : i32 {
      %c16_i32 = arith.constant 16 : i32
      %402 = arith.addi %c16_i32, %arg18 : i32
      %403 = arith.index_cast %402 : i32 to index
      %404 = memref.load %arg2[%403] : memref<48xi32, #tpu.memory_space<smem>>
      %c40_i32 = arith.constant 40 : i32
      %405 = arith.addi %c40_i32, %404 : i32
      %406 = arith.index_cast %405 : i32 to index
      %c0_241 = arith.constant 0 : index
      %407 = vector.load %arg8[%406, %c0_241] : memref<96x16xf32, #tpu.memory_space<vmem>>, vector<1x16xf32>
      %408 = arith.addf %arg19, %407 : vector<1x16xf32>
      scf.yield %408 : vector<1x16xf32>
    }
    %c7_200 = arith.constant 7 : index
    %c0_201 = arith.constant 0 : index
    %339 = vector.load %arg16[%c7_200, %c0_201] : memref<8x16xf32, #tpu.memory_space<vmem>>, vector<1x16xf32>
    tpu.vector_store %arg16[%c7_200, %c0_201], %338 {strides = array<i32>} : memref<8x16xf32, #tpu.memory_space<vmem>>, vector<1x16xf32>,
    %c18_i32_202 = arith.constant 18 : i32
    %340 = arith.addi %c18_i32_202, %17 : i32
    %c7_i32_203 = arith.constant 7 : i32
    %341 = arith.addi %340, %c7_i32_203 : i32
    %342 = arith.index_cast %341 : i32 to index
    %343 = memref.load %arg1[%342] : memref<27xi32, #tpu.memory_space<smem>>
    %c18_i32_204 = arith.constant 18 : i32
    %344 = arith.addi %c18_i32_204, %17 : i32
    %c7_i32_205 = arith.constant 7 : i32
    %345 = arith.addi %344, %c7_i32_205 : i32
    %c1_i32_206 = arith.constant 1 : i32
    %346 = arith.addi %345, %c1_i32_206 : i32
    %347 = arith.index_cast %346 : i32 to index
    %348 = memref.load %arg1[%347] : memref<27xi32, #tpu.memory_space<smem>>
    %cst_207 = arith.constant 0.000000e+00 : f32
    %349 = vector.broadcast %cst_207 : f32 to vector<1x16xf32>
    %350 = arith.subi %348, %343 : i32
    %351 = arith.addi %343, %350 : i32
    %c1_i32_208 = arith.constant 1 : i32
    %352 = scf.for %arg18 = %343 to %351 step %c1_i32_208 iter_args(%arg19 = %349) -> (vector<1x16xf32>)  : i32 {
      %c32_i32 = arith.constant 32 : i32
      %402 = arith.addi %c32_i32, %arg18 : i32
      %403 = arith.index_cast %402 : i32 to index
      %404 = memref.load %arg2[%403] : memref<48xi32, #tpu.memory_space<smem>>
      %c72_i32 = arith.constant 72 : i32
      %405 = arith.addi %c72_i32, %404 : i32
      %406 = arith.index_cast %405 : i32 to index
      %c0_241 = arith.constant 0 : index
      %407 = vector.load %arg8[%406, %c0_241] : memref<96x16xf32, #tpu.memory_space<vmem>>, vector<1x16xf32>
      %408 = arith.addf %arg19, %407 : vector<1x16xf32>
      scf.yield %408 : vector<1x16xf32>
    }
    %c7_209 = arith.constant 7 : index
    %c0_210 = arith.constant 0 : index
    %353 = vector.load %arg17[%c7_209, %c0_210] : memref<8x16xf32, #tpu.memory_space<vmem>>, vector<1x16xf32>
    tpu.vector_store %arg17[%c7_209, %c0_210], %352 {strides = array<i32>} : memref<8x16xf32, #tpu.memory_space<vmem>>, vector<1x16xf32>,
    %354 = vector.extract_strided_slice %16 {offsets = [0, 0], sizes = [8, 16], strides = [1, 1]} : vector<8x128xf32> to vector<8x16xf32>
    %c0_211 = arith.constant 0 : index
    %c0_212 = arith.constant 0 : index
    %355 = vector.load %arg15[%c0_211, %c0_212] : memref<8x16xf32, #tpu.memory_space<vmem>>, vector<8x16xf32>
    %c0_213 = arith.constant 0 : index
    %c0_214 = arith.constant 0 : index
    %356 = vector.load %arg16[%c0_213, %c0_214] : memref<8x16xf32, #tpu.memory_space<vmem>>, vector<8x16xf32>
    %c0_215 = arith.constant 0 : index
    %c0_216 = arith.constant 0 : index
    %357 = vector.load %arg17[%c0_215, %c0_216] : memref<8x16xf32, #tpu.memory_space<vmem>>, vector<8x16xf32>
    %358 = arith.mulf %355, %354 : vector<8x16xf32>
    %cst_217 = arith.constant dense<0.000000e+00> : vector<8xf32>
    %359 = vector.multi_reduction <add>, %358, %cst_217 [1] : vector<8x16xf32> to vector<8xf32>
    %360 = vector.shape_cast %359 : vector<8xf32> to vector<8x1xf32>
    %361 = arith.mulf %356, %354 : vector<8x16xf32>
    %cst_218 = arith.constant dense<0.000000e+00> : vector<8xf32>
    %362 = vector.multi_reduction <add>, %361, %cst_218 [1] : vector<8x16xf32> to vector<8xf32>
    %363 = vector.shape_cast %362 : vector<8xf32> to vector<8x1xf32>
    %364 = arith.mulf %356, %355 : vector<8x16xf32>
    %cst_219 = arith.constant dense<0.000000e+00> : vector<8xf32>
    %365 = vector.multi_reduction <add>, %364, %cst_219 [1] : vector<8x16xf32> to vector<8xf32>
    %366 = vector.shape_cast %365 : vector<8xf32> to vector<8x1xf32>
    %367 = arith.mulf %357, %354 : vector<8x16xf32>
    %cst_220 = arith.constant dense<0.000000e+00> : vector<8xf32>
    %368 = vector.multi_reduction <add>, %367, %cst_220 [1] : vector<8x16xf32> to vector<8xf32>
    %369 = vector.shape_cast %368 : vector<8xf32> to vector<8x1xf32>
    %370 = arith.mulf %357, %355 : vector<8x16xf32>
    %cst_221 = arith.constant dense<0.000000e+00> : vector<8xf32>
    %371 = vector.multi_reduction <add>, %370, %cst_221 [1] : vector<8x16xf32> to vector<8xf32>
    %372 = vector.shape_cast %371 : vector<8xf32> to vector<8x1xf32>
    %373 = arith.mulf %357, %356 : vector<8x16xf32>
    %cst_222 = arith.constant dense<0.000000e+00> : vector<8xf32>
    %374 = vector.multi_reduction <add>, %373, %cst_222 [1] : vector<8x16xf32> to vector<8xf32>
    %375 = vector.shape_cast %374 : vector<8xf32> to vector<8x1xf32>
    %cst_223 = arith.constant 0.000000e+00 : f32
    %376 = vector.broadcast %cst_223 : f32 to vector<8x1xf32>
    %377 = tpu.concatenate %360, %363, %366, %369, %372, %375, %376, %376 in 1 : vector<8x1xf32>, vector<8x1xf32>, vector<8x1xf32>, vector<8x1xf32>, vector<8x1xf32>, vector<8x1xf32>, vector<8x1xf32>, vector<8x1xf32> -> vector<8x8xf32>
    %378 = arith.truncf %16 : vector<8x128xf32> to vector<8x128xbf16>
    %c0_224 = arith.constant 0 : index
    %c0_225 = arith.constant 0 : index
    %379 = vector.load %arg9[%c0_224, %c0_225] : memref<128x128xbf16, #tpu.memory_space<vmem>>, vector<128x128xbf16>
    %cst_226 = arith.constant dense<0.000000e+00> : vector<8x128xf32>
    %380 = tpu.matmul %378, %379, %cst_226 {dimension_numbers = #tpu.dot_dimension_numbers<[1], [0], [0], [1], [0, 0, 1, 1], [], []>} : vector<8x128xbf16>, vector<128x128xbf16>, vector<8x128xf32> -> vector<8x128xf32>
    %381 = arith.truncf %377 : vector<8x8xf32> to vector<8x8xbf16>
    %c0_227 = arith.constant 0 : index
    %c0_228 = arith.constant 0 : index
    %382 = vector.load %arg10[%c0_227, %c0_228] : memref<8x128xbf16, #tpu.memory_space<vmem>>, vector<8x128xbf16>
    %cst_229 = arith.constant dense<0.000000e+00> : vector<8x128xf32>
    %383 = tpu.matmul %381, %382, %cst_229 {dimension_numbers = #tpu.dot_dimension_numbers<[1], [0], [0], [1], [0, 0, 1, 1], [], []>} : vector<8x8xbf16>, vector<8x128xbf16>, vector<8x128xf32> -> vector<8x128xf32>
    %384 = arith.addf %380, %383 : vector<8x128xf32>
    %c0_230 = arith.constant 0 : index
    %c0_231 = arith.constant 0 : index
    %385 = vector.load %arg11[%c0_230, %c0_231] : memref<1x128xf32, #tpu.memory_space<vmem>>, vector<1x128xf32>
    %386 = vector.broadcast %385 : vector<1x128xf32> to vector<8x128xf32>
    %387 = arith.addf %384, %386 : vector<8x128xf32>
    %cst_232 = arith.constant 0.000000e+00 : f32
    %388 = vector.broadcast %cst_232 : f32 to vector<8x128xf32>
    %389 = arith.maximumf %387, %388 : vector<8x128xf32>
    %c0_233 = arith.constant 0 : index
    %c0_234 = arith.constant 0 : index
    %390 = vector.load %arg12[%c0_233, %c0_234] : memref<128x128xbf16, #tpu.memory_space<vmem>>, vector<128x128xbf16>
    %c0_235 = arith.constant 0 : index
    %c0_236 = arith.constant 0 : index
    %391 = vector.load %arg13[%c0_235, %c0_236] : memref<1x128xf32, #tpu.memory_space<vmem>>, vector<1x128xf32>
    %392 = arith.truncf %389 : vector<8x128xf32> to vector<8x128xbf16>
    %cst_237 = arith.constant dense<0.000000e+00> : vector<8x128xf32>
    %393 = tpu.matmul %392, %390, %cst_237 {dimension_numbers = #tpu.dot_dimension_numbers<[1], [0], [0], [1], [0, 0, 1, 1], [], []>} : vector<8x128xbf16>, vector<128x128xbf16>, vector<8x128xf32> -> vector<8x128xf32>
    %394 = vector.broadcast %391 : vector<1x128xf32> to vector<8x128xf32>
    %395 = arith.addf %393, %394 : vector<8x128xf32>
    %396 = arith.negf %395 : vector<8x128xf32>
    %397 = math.exp %396 : vector<8x128xf32>
    %cst_238 = arith.constant 1.000000e+00 : f32
    %398 = vector.broadcast %cst_238 : f32 to vector<8x128xf32>
    %399 = arith.addf %398, %397 : vector<8x128xf32>
    %400 = arith.divf %398, %399 : vector<8x128xf32>
    %c0_239 = arith.constant 0 : index
    %c0_240 = arith.constant 0 : index
    %401 = vector.load %arg14[%c0_239, %c0_240] : memref<8x128xf32, #tpu.memory_space<vmem>>, vector<8x128xf32>
    tpu.vector_store %arg14[%c0_239, %c0_240], %400 {strides = array<i32>} : memref<8x128xf32, #tpu.memory_space<vmem>>, vector<8x128xf32>,
    return
  }
  func.func @transform_0(%arg0: i32, %arg1: memref<27xi32, #tpu.memory_space<smem>>, %arg2: memref<48xi32, #tpu.memory_space<smem>>) -> (i32, i32) {
    %c0_i32 = arith.constant 0 : i32
    %c0_i32_0 = arith.constant 0 : i32
    return %arg0, %c0_i32 : i32, i32
  }
  func.func @transform_1(%arg0: i32, %arg1: memref<27xi32, #tpu.memory_space<smem>>, %arg2: memref<48xi32, #tpu.memory_space<smem>>) -> (i32, i32) {
    %c0_i32 = arith.constant 0 : i32
    %c0_i32_0 = arith.constant 0 : i32
    %c0_i32_1 = arith.constant 0 : i32
    return %c0_i32, %c0_i32_0 : i32, i32
  }
  func.func @transform_2(%arg0: i32, %arg1: memref<27xi32, #tpu.memory_space<smem>>, %arg2: memref<48xi32, #tpu.memory_space<smem>>) -> (i32, i32) {
    %c0_i32 = arith.constant 0 : i32
    %c0_i32_0 = arith.constant 0 : i32
    %c0_i32_1 = arith.constant 0 : i32
    return %c0_i32, %c0_i32_0 : i32, i32
  }
  func.func @transform_3(%arg0: i32, %arg1: memref<27xi32, #tpu.memory_space<smem>>, %arg2: memref<48xi32, #tpu.memory_space<smem>>) -> (i32, i32) {
    %c0_i32 = arith.constant 0 : i32
    %c0_i32_0 = arith.constant 0 : i32
    %c0_i32_1 = arith.constant 0 : i32
    return %c0_i32, %c0_i32_0 : i32, i32
  }
  func.func @transform_4(%arg0: i32, %arg1: memref<27xi32, #tpu.memory_space<smem>>, %arg2: memref<48xi32, #tpu.memory_space<smem>>) -> (i32, i32) {
    %c0_i32 = arith.constant 0 : i32
    %c0_i32_0 = arith.constant 0 : i32
    %c0_i32_1 = arith.constant 0 : i32
    return %c0_i32, %c0_i32_0 : i32, i32
  }
  func.func @transform_5(%arg0: i32, %arg1: memref<27xi32, #tpu.memory_space<smem>>, %arg2: memref<48xi32, #tpu.memory_space<smem>>) -> (i32, i32) {
    %c0_i32 = arith.constant 0 : i32
    %c0_i32_0 = arith.constant 0 : i32
    %c0_i32_1 = arith.constant 0 : i32
    return %c0_i32, %c0_i32_0 : i32, i32
  }
  func.func @transform_6(%arg0: i32, %arg1: memref<27xi32, #tpu.memory_space<smem>>, %arg2: memref<48xi32, #tpu.memory_space<smem>>) -> (i32, i32) {
    %c0_i32 = arith.constant 0 : i32
    %c0_i32_0 = arith.constant 0 : i32
    %c0_i32_1 = arith.constant 0 : i32
    return %c0_i32, %c0_i32_0 : i32, i32
  }
  func.func @transform_7(%arg0: i32, %arg1: memref<27xi32, #tpu.memory_space<smem>>, %arg2: memref<48xi32, #tpu.memory_space<smem>>) -> (i32, i32) {
    %c0_i32 = arith.constant 0 : i32
    %c0_i32_0 = arith.constant 0 : i32
    %c0_i32_1 = arith.constant 0 : i32
    return %c0_i32, %c0_i32_0 : i32, i32
  }
  func.func @transform_8(%arg0: i32, %arg1: memref<27xi32, #tpu.memory_space<smem>>, %arg2: memref<48xi32, #tpu.memory_space<smem>>) -> (i32, i32) {
    %c0_i32 = arith.constant 0 : i32
    %c0_i32_0 = arith.constant 0 : i32
    %c0_i32_1 = arith.constant 0 : i32
    return %c0_i32, %c0_i32_0 : i32, i32
  }
  func.func @transform_9(%arg0: i32, %arg1: memref<27xi32, #tpu.memory_space<smem>>, %arg2: memref<48xi32, #tpu.memory_space<smem>>) -> (i32, i32) {
    %c0_i32 = arith.constant 0 : i32
    %c0_i32_0 = arith.constant 0 : i32
    %c0_i32_1 = arith.constant 0 : i32
    return %c0_i32, %c0_i32_0 : i32, i32
  }
  func.func @transform_10(%arg0: i32, %arg1: memref<27xi32, #tpu.memory_space<smem>>, %arg2: memref<48xi32, #tpu.memory_space<smem>>) -> (i32, i32) {
    %c0_i32 = arith.constant 0 : i32
    %c0_i32_0 = arith.constant 0 : i32
    %c0_i32_1 = arith.constant 0 : i32
    return %c0_i32, %c0_i32_0 : i32, i32
  }
  func.func @transform_11(%arg0: i32, %arg1: memref<27xi32, #tpu.memory_space<smem>>, %arg2: memref<48xi32, #tpu.memory_space<smem>>) -> (i32, i32) {
    %c0_i32 = arith.constant 0 : i32
    %c0_i32_0 = arith.constant 0 : i32
    return %arg0, %c0_i32 : i32, i32
  }
}

</mosaic_0001>

<llo_original>
// kernel: forward.1
$region0: #{forward.1}
  #allocation0 [shape = 'u32[]', space=smem, size = 0x4, offset = 0x4, fixed_abs, tag = 'smem constant byte address 0x4 - core index']
  #allocation1 [shape = 'u32[72,128]{1,0:T(1,128)}', space=vmem, size = 0x9000, scoped, tag = 'internal scratch']
  #allocation2 [shape = 'f32[8,16]{1,0:T(8,128)}', space=vmem, size = 0x1000, scoped, tag = 'scratch operand']
  #allocation3 [shape = 'f32[8,16]{1,0:T(8,128)}', space=vmem, size = 0x1000, scoped, tag = 'scratch operand']
  #allocation4 [shape = 'f32[8,16]{1,0:T(8,128)}', space=vmem, size = 0x1000, scoped, tag = 'scratch operand']
  #allocation5 [shape = 's32[1]{0}', space=sflag, size = 0x4, scoped, tag = 'scoped memory for forward.1']
  #allocation6 [shape = 'u8[512]{0}', space=smem, size = 0x200, scoped, tag = 'prefetched SMEM operand 0']
  #allocation7 [shape = 'u8[512]{0}', space=smem, size = 0x200, scoped, tag = 'prefetched SMEM operand 1']
  %s0 = inlined_call_operand.vmem [shape: s32[27], index: 0, kind: input, shape index: {}]
  %s1 = inlined_call_operand.vmem [shape: s32[48], index: 1, kind: input, shape index: {}]
  %s2 = inlined_call_operand.vmem [shape: f32[8,128], index: 2, kind: input, shape index: {}]
  %s3 = inlined_call_operand.hbm [shape: bf16[128,128], index: 3, kind: input, shape index: {}]
  %s4 = inlined_call_operand.vmem [shape: f32[1,128], index: 4, kind: input, shape index: {}]
  %s5 = inlined_call_operand.hbm [shape: bf16[128,128], index: 5, kind: input, shape index: {}]
  %s6 = inlined_call_operand.vmem [shape: f32[1,128], index: 6, kind: input, shape index: {}]
  %s7 = inlined_call_operand.hbm [shape: f32[96,16], index: 7, kind: input, shape index: {}]
  %s8 = inlined_call_operand.hbm [shape: bf16[128,128], index: 8, kind: input, shape index: {}]
  %s9 = inlined_call_operand.vmem [shape: bf16[8,128], index: 9, kind: input, shape index: {}]
  %s10 = inlined_call_operand.vmem [shape: f32[1,128], index: 10, kind: input, shape index: {}]
  %s11 = inlined_call_operand.hbm [shape: bf16[128,128], index: 11, kind: input, shape index: {}]
  %s12 = inlined_call_operand.vmem [shape: f32[1,128], index: 12, kind: input, shape index: {}]
  %s13 = inlined_call_operand.vmem [shape: f32[8,128], index: 13, kind: output, shape index: {}]
  %s14 = sld [smem:[#allocation0]]
  $region242: #{forward.1} parent=0
    _
  %s16 = ssub.s32 1, %s14
  %s17 = scalar_select 0, %s16, %s14
  %s19 = sshll.u32 %s0, 4
  %s20 = int_to_ptr.vmem [resolvable:$true] %s19
  %22 = dma.vmem_to_smem %s20, 16, [#allocation6], [#allocation5]
  %s24 = sshll.u32 %s1, 4
  %s25 = int_to_ptr.vmem [resolvable:$true] %s24
  %27 = dma.vmem_to_smem %s25, 16, [#allocation7], [#allocation5]
  %29 = dma.done [#allocation5], 32
  %30 = sfence
  $region1: #{forward.1} parent=0
    #allocation8 [shape = 'u8[32768]{0}', space=vmem, size = 0x8000, scoped, tag = 'input window, operand 3, single buffered']
    #allocation9 [shape = 's32[1]{0}', space=sflag, size = 0x4, scoped, tag = 'scoped memory for forward.1']
    #allocation10 [shape = 'u8[32768]{0}', space=vmem, size = 0x8000, scoped, tag = 'input window, operand 5, single buffered']
    #allocation11 [shape = 's32[1]{0}', space=sflag, size = 0x4, scoped, tag = 'scoped memory for forward.1']
    #allocation12 [shape = 'u8[49152]{0}', space=vmem, size = 0xc000, scoped, tag = 'input window, operand 7, single buffered']
    #allocation13 [shape = 'u8[32768]{0}', space=vmem, size = 0x8000, scoped, tag = 'input window, operand 8, single buffered']
    #allocation14 [shape = 's32[1]{0}', space=sflag, size = 0x4, scoped, tag = 'scoped memory for forward.1']
    #allocation15 [shape = 'u8[32768]{0}', space=vmem, size = 0x8000, scoped, tag = 'input window, operand 11, single buffered']
    %31 = vsyncpa [#allocation9], 0
    %32 = vsyncpa [#allocation11], 0
    %33 = vsyncpa [#allocation14], 0
    // Predicated region
    $region2: #{forward.1} parent=1 // pred_check
      _
    $region3: #{forward.1} parent=1 // pred_check_branch
      %35 = sbr.rel (0) target = $region5
    $region4: #{forward.1} parent=1 // pred_region
      _
    $region5: #{forward.1} parent=1 // pred_fallthru
      _
    // Predicated region
    $region6: #{forward.1} parent=1 // pred_check
      _
    $region7: #{forward.1} parent=1 // pred_check_branch
      %37 = sbr.rel (0) target = $region9
    $region8: #{forward.1} parent=1 // pred_region
      %39 = vsyncadd [#allocation9], 0
      %s40 = sshll.u32 %s3, 4
      %s41 = int_to_ptr.hbm [resolvable:$true] %s40
      %s42 = sshll.u32 [#allocation8], 4
      %s43 = int_to_ptr.vmem [resolvable:$true] %s42
      %48 = dma.hbm_to_vmem [thread:$0]  %s41, 1024, %s43, [#allocation9], 64, 64, 4
    $region9: #{forward.1} parent=1 // pred_fallthru
      _
    // Predicated region
    $region10: #{forward.1} parent=1 // pred_check
      _
    $region11: #{forward.1} parent=1 // pred_check_branch
      %50 = sbr.rel (0) target = $region13
    $region12: #{forward.1} parent=1 // pred_region
      _
    $region13: #{forward.1} parent=1 // pred_fallthru
      _
    // Predicated region
    $region14: #{forward.1} parent=1 // pred_check
      _
    $region15: #{forward.1} parent=1 // pred_check_branch
      %52 = sbr.rel (0) target = $region17
    $region16: #{forward.1} parent=1 // pred_region
      %54 = vsyncadd [#allocation11], 0
      %s55 = sshll.u32 %s5, 4
      %s56 = int_to_ptr.hbm [resolvable:$true] %s55
      %s57 = sshll.u32 [#allocation10], 4
      %s58 = int_to_ptr.vmem [resolvable:$true] %s57
      %63 = dma.hbm_to_vmem [thread:$0]  %s56, 1024, %s58, [#allocation11], 64, 64, 4
    $region17: #{forward.1} parent=1 // pred_fallthru
      _
    // Predicated region
    $region18: #{forward.1} parent=1 // pred_check
      _
    $region19: #{forward.1} parent=1 // pred_check_branch
      %65 = sbr.rel (0) target = $region21
    $region20: #{forward.1} parent=1 // pred_region
      _
    $region21: #{forward.1} parent=1 // pred_fallthru
      _
    // Predicated region
    $region22: #{forward.1} parent=1 // pred_check
      _
    $region23: #{forward.1} parent=1 // pred_check_branch
      %67 = sbr.rel (0) target = $region25
    $region24: #{forward.1} parent=1 // pred_region
      %69 = vsyncadd [#allocation11], 0
      %s70 = sshll.u32 %s7, 4
      %s71 = int_to_ptr.hbm [resolvable:$true] %s70
      %s72 = sshll.u32 [#allocation12], 4
      %s73 = int_to_ptr.vmem [resolvable:$true] %s72
      %78 = dma.hbm_to_vmem [thread:$0]  %s71, 1536, %s73, [#allocation11], 128, 128, 8
    $region25: #{forward.1} parent=1 // pred_fallthru
      _
    // Predicated region
    $region26: #{forward.1} parent=1 // pred_check
      _
    $region27: #{forward.1} parent=1 // pred_check_branch
      %80 = sbr.rel (0) target = $region29
    $region28: #{forward.1} parent=1 // pred_region
      %82 = vsyncadd [#allocation14], 0
      %s83 = sshll.u32 %s8, 4
      %s84 = int_to_ptr.hbm [resolvable:$true] %s83
      %s85 = sshll.u32 [#allocation13], 4
      %s86 = int_to_ptr.vmem [resolvable:$true] %s85
      %91 = dma.hbm_to_vmem [thread:$0]  %s84, 1024, %s86, [#allocation14], 64, 64, 4
    $region29: #{forward.1} parent=1 // pred_fallthru
      _
    // Predicated region
    $region30: #{forward.1} parent=1 // pred_check
      _
    $region31: #{forward.1} parent=1 // pred_check_branch
      %93 = sbr.rel (0) target = $region33
    $region32: #{forward.1} parent=1 // pred_region
      _
    $region33: #{forward.1} parent=1 // pred_fallthru
      _
    // Predicated region
    $region34: #{forward.1} parent=1 // pred_check
      _
    $region35: #{forward.1} parent=1 // pred_check_branch
      %95 = sbr.rel (0) target = $region37
    $region36: #{forward.1} parent=1 // pred_region
      _
    $region37: #{forward.1} parent=1 // pred_fallthru
      _
    // Predicated region
    $region38: #{forward.1} parent=1 // pred_check
      _
    $region39: #{forward.1} parent=1 // pred_check_branch
      %97 = sbr.rel (0) target = $region41
    $region40: #{forward.1} parent=1 // pred_region
      %99 = vsyncadd [#allocation14], 0
      %s100 = sshll.u32 %s11, 4
      %s101 = int_to_ptr.hbm [resolvable:$true] %s100
      %s102 = sshll.u32 [#allocation15], 4
      %s103 = int_to_ptr.vmem [resolvable:$true] %s102
      %108 = dma.hbm_to_vmem [thread:$0]  %s101, 1024, %s103, [#allocation14], 64, 64, 4
    $region41: #{forward.1} parent=1 // pred_fallthru
      _
    // Predicated region
    $region42: #{forward.1} parent=1 // pred_check
      _
    $region43: #{forward.1} parent=1 // pred_check_branch
      %110 = sbr.rel (0) target = $region45
    $region44: #{forward.1} parent=1 // pred_region
      _
    $region45: #{forward.1} parent=1 // pred_fallthru
      _
    // Predicated region
    $region46: #{forward.1} parent=1 // pred_check
      _
    $region47: #{forward.1} parent=1 // pred_check_branch
      %112 = sbr.rel (0) target = $region49
    $region48: #{forward.1} parent=1 // pred_region
      %114 = dma.done [#allocation9], 1024
    $region49: #{forward.1} parent=1 // pred_fallthru
      _
    // Predicated region
    $region50: #{forward.1} parent=1 // pred_check
      _
    $region51: #{forward.1} parent=1 // pred_check_branch
      %116 = sbr.rel (0) target = $region53
    $region52: #{forward.1} parent=1 // pred_region
      %118 = dma.done [#allocation11], 1024
    $region53: #{forward.1} parent=1 // pred_fallthru
      _
    // Predicated region
    $region54: #{forward.1} parent=1 // pred_check
      _
    $region55: #{forward.1} parent=1 // pred_check_branch
      %120 = sbr.rel (0) target = $region57
    $region56: #{forward.1} parent=1 // pred_region
      %122 = dma.done [#allocation11], 1536
    $region57: #{forward.1} parent=1 // pred_fallthru
      _
    // Predicated region
    $region58: #{forward.1} parent=1 // pred_check
      _
    $region59: #{forward.1} parent=1 // pred_check_branch
      %124 = sbr.rel (0) target = $region61
    $region60: #{forward.1} parent=1 // pred_region
      %126 = dma.done [#allocation14], 1024
    $region61: #{forward.1} parent=1 // pred_fallthru
      _
    // Predicated region
    $region62: #{forward.1} parent=1 // pred_check
      _
    $region63: #{forward.1} parent=1 // pred_check_branch
      %128 = sbr.rel (0) target = $region65
    $region64: #{forward.1} parent=1 // pred_region
      %130 = dma.done [#allocation14], 1024
    $region65: #{forward.1} parent=1 // pred_fallthru
      _
    %v132 = vld [vmem:[%s2] sm:$0xff]
    %v133 = vld [vmem:[#allocation8] sm:$0xf]
    %v134 = vld [vmem:[#allocation8 + $0x4] sm:$0xf]
    %v135 = vld [vmem:[#allocation8 + $0x8] sm:$0xf]
    %v136 = vld [vmem:[#allocation8 + $0xc] sm:$0xf]
    %v137 = vld [vmem:[#allocation8 + $0x10] sm:$0xf]
    %v138 = vld [vmem:[#allocation8 + $0x14] sm:$0xf]
    %v139 = vld [vmem:[#allocation8 + $0x18] sm:$0xf]
    %v140 = vld [vmem:[#allocation8 + $0x1c] sm:$0xf]
    %v141 = vld [vmem:[#allocation8 + $0x20] sm:$0xf]
    %v142 = vld [vmem:[#allocation8 + $0x24] sm:$0xf]
    %v143 = vld [vmem:[#allocation8 + $0x28] sm:$0xf]
    %v144 = vld [vmem:[#allocation8 + $0x2c] sm:$0xf]
    %v145 = vld [vmem:[#allocation8 + $0x30] sm:$0xf]
    %v146 = vld [vmem:[#allocation8 + $0x34] sm:$0xf]
    %v147 = vld [vmem:[#allocation8 + $0x38] sm:$0xf]
    %v148 = vld [vmem:[#allocation8 + $0x3c] sm:$0xf]
    %v149 = vld [vmem:[%s4] sm:$0x1]
    %v150 = vpack.c.bf16 %v132, %v132
    %v152 = vperm.slane %v149, 0
    %v170 = vunpack.c.l.b16 %v133
    %v171 = vunpack.c.l.b16 %v134
    %v172 = vunpack.c.l.b16 %v135
    %v173 = vunpack.c.l.b16 %v136
    %v174 = vunpack.c.l.b16 %v137
    %v175 = vunpack.c.l.b16 %v138
    %v176 = vunpack.c.l.b16 %v139
    %v177 = vunpack.c.l.b16 %v140
    %v178 = vunpack.c.l.b16 %v141
    %v179 = vunpack.c.l.b16 %v142
    %v180 = vunpack.c.l.b16 %v143
    %v181 = vunpack.c.l.b16 %v144
    %v182 = vunpack.c.l.b16 %v145
    %v183 = vunpack.c.l.b16 %v146
    %v184 = vunpack.c.l.b16 %v147
    %v185 = vunpack.c.l.b16 %v148
    %v186 = vpack.c.b16 %v171, %v170
    %v187 = vpack.c.b16 %v173, %v172
    %v188 = vpack.c.b16 %v175, %v174
    %v189 = vpack.c.b16 %v177, %v176
    %v190 = vpack.c.b16 %v179, %v178
    %v191 = vpack.c.b16 %v181, %v180
    %v192 = vpack.c.b16 %v183, %v182
    %v193 = vpack.c.b16 %v185, %v184
    %202 = vmatpush.bf16.msra.mxu0 %v193
    %203 = vmatpush.bf16.msra.mxu0 %v192
    %204 = vmatpush.bf16.msra.mxu0 %v191
    %205 = vmatpush.bf16.msra.mxu0 %v190
    %206 = vmatpush.bf16.msra.mxu0 %v189
    %207 = vmatpush.bf16.msra.mxu0 %v188
    %208 = vmatpush.bf16.msra.mxu0 %v187
    %209 = vmatpush.bf16.msra.mxu0 %v186
    %210 = vmatmul.bf16.gmra.mxu0 %v150
    %v211 = vpop.f32.mrf.mxu0
    %v212 = vadd.f32 %v152, %v211
    %v213 = vpop.f32.mrf.mxu0
    %214 = vdwg.mxu0
    %v215 = vmax.f32 %v212, 0.0
    %v216 = vld [vmem:[#allocation10] sm:$0xf]
    %v217 = vld [vmem:[#allocation10 + $0x4] sm:$0xf]
    %v218 = vld [vmem:[#allocation10 + $0x8] sm:$0xf]
    %v219 = vld [vmem:[#allocation10 + $0xc] sm:$0xf]
    %v220 = vld [vmem:[#allocation10 + $0x10] sm:$0xf]
    %v221 = vld [vmem:[#allocation10 + $0x14] sm:$0xf]
    %v222 = vld [vmem:[#allocation10 + $0x18] sm:$0xf]
    %v223 = vld [vmem:[#allocation10 + $0x1c] sm:$0xf]
    %v224 = vld [vmem:[#allocation10 + $0x20] sm:$0xf]
    %v225 = vld [vmem:[#allocation10 + $0x24] sm:$0xf]
    %v226 = vld [vmem:[#allocation10 + $0x28] sm:$0xf]
    %v227 = vld [vmem:[#allocation10 + $0x2c] sm:$0xf]
    %v228 = vld [vmem:[#allocation10 + $0x30] sm:$0xf]
    %v229 = vld [vmem:[#allocation10 + $0x34] sm:$0xf]
    %v230 = vld [vmem:[#allocation10 + $0x38] sm:$0xf]
    %v231 = vld [vmem:[#allocation10 + $0x3c] sm:$0xf]
    %v232 = vld [vmem:[%s6] sm:$0x1]
    %v233 = vpack.c.bf16 %v215, %v215
    %v235 = vperm.slane %v232, 0
    %v253 = vunpack.c.l.b16 %v216
    %v254 = vunpack.c.l.b16 %v217
    %v255 = vunpack.c.l.b16 %v218
    %v256 = vunpack.c.l.b16 %v219
    %v257 = vunpack.c.l.b16 %v220
    %v258 = vunpack.c.l.b16 %v221
    %v259 = vunpack.c.l.b16 %v222
    %v260 = vunpack.c.l.b16 %v223
    %v261 = vunpack.c.l.b16 %v224
    %v262 = vunpack.c.l.b16 %v225
    %v263 = vunpack.c.l.b16 %v226
    %v264 = vunpack.c.l.b16 %v227
    %v265 = vunpack.c.l.b16 %v228
    %v266 = vunpack.c.l.b16 %v229
    %v267 = vunpack.c.l.b16 %v230
    %v268 = vunpack.c.l.b16 %v231
    %v269 = vpack.c.b16 %v254, %v253
    %v270 = vpack.c.b16 %v256, %v255
    %v271 = vpack.c.b16 %v258, %v257
    %v272 = vpack.c.b16 %v260, %v259
    %v273 = vpack.c.b16 %v262, %v261
    %v274 = vpack.c.b16 %v264, %v263
    %v275 = vpack.c.b16 %v266, %v265
    %v276 = vpack.c.b16 %v268, %v267
    %285 = vmatpush.bf16.msra.mxu0 %v276
    %286 = vmatpush.bf16.msra.mxu0 %v275
    %287 = vmatpush.bf16.msra.mxu0 %v274
    %288 = vmatpush.bf16.msra.mxu0 %v273
    %289 = vmatpush.bf16.msra.mxu0 %v272
    %290 = vmatpush.bf16.msra.mxu0 %v271
    %291 = vmatpush.bf16.msra.mxu0 %v270
    %292 = vmatpush.bf16.msra.mxu0 %v269
    %293 = vmatmul.bf16.gmra.mxu0 %v233
    %v294 = vpop.f32.mrf.mxu0
    %v295 = vadd.f32 %v235, %v294
    %v296 = vpop.f32.mrf.mxu0
    %297 = vdwg.mxu0
    %v298 = vmax.f32 %v295, 0.0
    %s299 = smul.u32 0, 8
    %s300 = sld [smem:[#allocation6 + %s299]]
    %s301 = sadd.s32 %s299, 1
    %s302 = sld [smem:[#allocation6 + %s301]]
    // While loop
    $region66: #{forward.1} parent=1 // loop_pre_header
      _
    $region67: #{forward.1} parent=1 // loop_header
      %s304 = sphi %s300, %s306
      %p305 = scmp.ge.s32.totalorder %s304, %s302
      %v309 = vphi 0.0, %v313
    $region68: #{forward.1} parent=1 // loop_header_branch
      %308 = sbr.rel (%p305) target = $region72
    $region69: #{forward.1} parent=1 // loop_body
      %s310 = sld [smem:[#allocation7 + %s304]]
      %s311 = scalar_lea.vmem [#allocation12], %s310
      %v312 = vld [vmem:[%s311] sm:$0x1]
      %v313 = vadd.f32 %v309, %v312
    $region70: #{forward.1} parent=1 // loop_footer
      %s306 = sadd.s32 %s304, 1
    $region71: #{forward.1} parent=1 // loop_footer_branch
      %303 = sbr.rel target = $region67
    $region72: #{forward.1} parent=1 // loop_exit
      _
    %vm314 = vcmask 122880
    %315 = vst.msk [vmem:[#allocation2] sm:$0x1] %vm314, %v309
    %s316 = sadd.s32 %s299, 9
    %s317 = sld [smem:[#allocation6 + %s316]]
    %s318 = sadd.s32 %s299, 10
    %s319 = sld [smem:[#allocation6 + %s318]]
    // While loop
    $region73: #{forward.1} parent=1 // loop_pre_header
      _
    $region74: #{forward.1} parent=1 // loop_header
      %s321 = sphi %s317, %s323
      %p322 = scmp.ge.s32.totalorder %s321, %s319
      %v326 = vphi 0.0, %v332
    $region75: #{forward.1} parent=1 // loop_header_branch
      %325 = sbr.rel (%p322) target = $region79
    $region76: #{forward.1} parent=1 // loop_body
      %s327 = sadd.s32 %s321, 16
      %s328 = sld [smem:[#allocation7 + %s327]]
      %s329 = sadd.s32 %s328, 40
      %s330 = scalar_lea.vmem [#allocation12], %s329
      %v331 = vld [vmem:[%s330] sm:$0x1]
      %v332 = vadd.f32 %v326, %v331
    $region77: #{forward.1} parent=1 // loop_footer
      %s323 = sadd.s32 %s321, 1
    $region78: #{forward.1} parent=1 // loop_footer_branch
      %320 = sbr.rel target = $region74
    $region79: #{forward.1} parent=1 // loop_exit
      _
    %333 = vst.msk [vmem:[#allocation3] sm:$0x1] %vm314, %v326
    %s334 = sadd.s32 %s299, 18
    %s335 = sld [smem:[#allocation6 + %s334]]
    %s336 = sadd.s32 %s299, 19
    %s337 = sld [smem:[#allocation6 + %s336]]
    // While loop
    $region80: #{forward.1} parent=1 // loop_pre_header
      _
    $region81: #{forward.1} parent=1 // loop_header
      %s339 = sphi %s335, %s341
      %p340 = scmp.ge.s32.totalorder %s339, %s337
      %v344 = vphi 0.0, %v350
    $region82: #{forward.1} parent=1 // loop_header_branch
      %343 = sbr.rel (%p340) target = $region86
    $region83: #{forward.1} parent=1 // loop_body
      %s345 = sadd.s32 %s339, 32
      %s346 = sld [smem:[#allocation7 + %s345]]
      %s347 = sadd.s32 %s346, 72
      %s348 = scalar_lea.vmem [#allocation12], %s347
      %v349 = vld [vmem:[%s348] sm:$0x1]
      %v350 = vadd.f32 %v344, %v349
    $region84: #{forward.1} parent=1 // loop_footer
      %s341 = sadd.s32 %s339, 1
    $region85: #{forward.1} parent=1 // loop_footer_branch
      %338 = sbr.rel target = $region81
    $region86: #{forward.1} parent=1 // loop_exit
      _
    %351 = vst.msk [vmem:[#allocation4] sm:$0x1] %vm314, %v344
    %s352 = sld [smem:[#allocation6 + %s301]]
    %s353 = sadd.s32 %s299, 2
    %s354 = sld [smem:[#allocation6 + %s353]]
    // While loop
    $region87: #{forward.1} parent=1 // loop_pre_header
      _
    $region88: #{forward.1} parent=1 // loop_header
      %s356 = sphi %s352, %s358
      %p357 = scmp.ge.s32.totalorder %s356, %s354
      %v361 = vphi 0.0, %v365
    $region89: #{forward.1} parent=1 // loop_header_branch
      %360 = sbr.rel (%p357) target = $region93
    $region90: #{forward.1} parent=1 // loop_body
      %s362 = sld [smem:[#allocation7 + %s356]]
      %s363 = scalar_lea.vmem [#allocation12], %s362
      %v364 = vld [vmem:[%s363] sm:$0x1]
      %v365 = vadd.f32 %v361, %v364
    $region91: #{forward.1} parent=1 // loop_footer
      %s358 = sadd.s32 %s356, 1
    $region92: #{forward.1} parent=1 // loop_footer_branch
      %355 = sbr.rel target = $region88
    $region93: #{forward.1} parent=1 // loop_exit
      _
    %366 = vst.msk [vmem:[#allocation2 + $0x1] sm:$0x1] %vm314, %v361
    %s367 = sld [smem:[#allocation6 + %s318]]
    %s368 = sadd.s32 %s299, 11
    %s369 = sld [smem:[#allocation6 + %s368]]
    // While loop
    $region94: #{forward.1} parent=1 // loop_pre_header
      _
    $region95: #{forward.1} parent=1 // loop_header
      %s371 = sphi %s367, %s373
      %p372 = scmp.ge.s32.totalorder %s371, %s369
      %v376 = vphi 0.0, %v382
    $region96: #{forward.1} parent=1 // loop_header_branch
      %375 = sbr.rel (%p372) target = $region100
    $region97: #{forward.1} parent=1 // loop_body
      %s377 = sadd.s32 %s371, 16
      %s378 = sld [smem:[#allocation7 + %s377]]
      %s379 = sadd.s32 %s378, 40
      %s380 = scalar_lea.vmem [#allocation12], %s379
      %v381 = vld [vmem:[%s380] sm:$0x1]
      %v382 = vadd.f32 %v376, %v381
    $region98: #{forward.1} parent=1 // loop_footer
      %s373 = sadd.s32 %s371, 1
    $region99: #{forward.1} parent=1 // loop_footer_branch
      %370 = sbr.rel target = $region95
    $region100: #{forward.1} parent=1 // loop_exit
      _
    %383 = vst.msk [vmem:[#allocation3 + $0x1] sm:$0x1] %vm314, %v376
    %s384 = sld [smem:[#allocation6 + %s336]]
    %s385 = sadd.s32 %s299, 20
    %s386 = sld [smem:[#allocation6 + %s385]]
    // While loop
    $region101: #{forward.1} parent=1 // loop_pre_header
      _
    $region102: #{forward.1} parent=1 // loop_header
      %s388 = sphi %s384, %s390
      %p389 = scmp.ge.s32.totalorder %s388, %s386
      %v393 = vphi 0.0, %v399
    $region103: #{forward.1} parent=1 // loop_header_branch
      %392 = sbr.rel (%p389) target = $region107
    $region104: #{forward.1} parent=1 // loop_body
      %s394 = sadd.s32 %s388, 32
      %s395 = sld [smem:[#allocation7 + %s394]]
      %s396 = sadd.s32 %s395, 72
      %s397 = scalar_lea.vmem [#allocation12], %s396
      %v398 = vld [vmem:[%s397] sm:$0x1]
      %v399 = vadd.f32 %v393, %v398
    $region105: #{forward.1} parent=1 // loop_footer
      %s390 = sadd.s32 %s388, 1
    $region106: #{forward.1} parent=1 // loop_footer_branch
      %387 = sbr.rel target = $region102
    $region107: #{forward.1} parent=1 // loop_exit
      _
    %400 = vst.msk [vmem:[#allocation4 + $0x1] sm:$0x1] %vm314, %v393
    %s401 = sld [smem:[#allocation6 + %s353]]
    %s402 = sadd.s32 %s299, 3
    %s403 = sld [smem:[#allocation6 + %s402]]
    // While loop
    $region108: #{forward.1} parent=1 // loop_pre_header
      _
    $region109: #{forward.1} parent=1 // loop_header
      %s405 = sphi %s401, %s407
      %p406 = scmp.ge.s32.totalorder %s405, %s403
      %v410 = vphi 0.0, %v414
    $region110: #{forward.1} parent=1 // loop_header_branch
      %409 = sbr.rel (%p406) target = $region114
    $region111: #{forward.1} parent=1 // loop_body
      %s411 = sld [smem:[#allocation7 + %s405]]
      %s412 = scalar_lea.vmem [#allocation12], %s411
      %v413 = vld [vmem:[%s412] sm:$0x1]
      %v414 = vadd.f32 %v410, %v413
    $region112: #{forward.1} parent=1 // loop_footer
      %s407 = sadd.s32 %s405, 1
    $region113: #{forward.1} parent=1 // loop_footer_branch
      %404 = sbr.rel target = $region109
    $region114: #{forward.1} parent=1 // loop_exit
      _
    %415 = vst.msk [vmem:[#allocation2 + $0x2] sm:$0x1] %vm314, %v410
    %s416 = sld [smem:[#allocation6 + %s368]]
    %s417 = sadd.s32 %s299, 12
    %s418 = sld [smem:[#allocation6 + %s417]]
    // While loop
    $region115: #{forward.1} parent=1 // loop_pre_header
      _
    $region116: #{forward.1} parent=1 // loop_header
      %s420 = sphi %s416, %s422
      %p421 = scmp.ge.s32.totalorder %s420, %s418
      %v425 = vphi 0.0, %v431
    $region117: #{forward.1} parent=1 // loop_header_branch
      %424 = sbr.rel (%p421) target = $region121
    $region118: #{forward.1} parent=1 // loop_body
      %s426 = sadd.s32 %s420, 16
      %s427 = sld [smem:[#allocation7 + %s426]]
      %s428 = sadd.s32 %s427, 40
      %s429 = scalar_lea.vmem [#allocation12], %s428
      %v430 = vld [vmem:[%s429] sm:$0x1]
      %v431 = vadd.f32 %v425, %v430
    $region119: #{forward.1} parent=1 // loop_footer
      %s422 = sadd.s32 %s420, 1
    $region120: #{forward.1} parent=1 // loop_footer_branch
      %419 = sbr.rel target = $region116
    $region121: #{forward.1} parent=1 // loop_exit
      _
    %432 = vst.msk [vmem:[#allocation3 + $0x2] sm:$0x1] %vm314, %v425
    %s433 = sld [smem:[#allocation6 + %s385]]
    %s434 = sadd.s32 %s299, 21
    %s435 = sld [smem:[#allocation6 + %s434]]
    // While loop
    $region122: #{forward.1} parent=1 // loop_pre_header
      _
    $region123: #{forward.1} parent=1 // loop_header
      %s437 = sphi %s433, %s439
      %p438 = scmp.ge.s32.totalorder %s437, %s435
      %v442 = vphi 0.0, %v448
    $region124: #{forward.1} parent=1 // loop_header_branch
      %441 = sbr.rel (%p438) target = $region128
    $region125: #{forward.1} parent=1 // loop_body
      %s443 = sadd.s32 %s437, 32
      %s444 = sld [smem:[#allocation7 + %s443]]
      %s445 = sadd.s32 %s444, 72
      %s446 = scalar_lea.vmem [#allocation12], %s445
      %v447 = vld [vmem:[%s446] sm:$0x1]
      %v448 = vadd.f32 %v442, %v447
    $region126: #{forward.1} parent=1 // loop_footer
      %s439 = sadd.s32 %s437, 1
    $region127: #{forward.1} parent=1 // loop_footer_branch
      %436 = sbr.rel target = $region123
    $region128: #{forward.1} parent=1 // loop_exit
      _
    %449 = vst.msk [vmem:[#allocation4 + $0x2] sm:$0x1] %vm314, %v442
    %s450 = sld [smem:[#allocation6 + %s402]]
    %s451 = sadd.s32 %s299, 4
    %s452 = sld [smem:[#allocation6 + %s451]]
    // While loop
    $region129: #{forward.1} parent=1 // loop_pre_header
      _
    $region130: #{forward.1} parent=1 // loop_header
      %s454 = sphi %s450, %s456
      %p455 = scmp.ge.s32.totalorder %s454, %s452
      %v459 = vphi 0.0, %v463
    $region131: #{forward.1} parent=1 // loop_header_branch
      %458 = sbr.rel (%p455) target = $region135
    $region132: #{forward.1} parent=1 // loop_body
      %s460 = sld [smem:[#allocation7 + %s454]]
      %s461 = scalar_lea.vmem [#allocation12], %s460
      %v462 = vld [vmem:[%s461] sm:$0x1]
      %v463 = vadd.f32 %v459, %v462
    $region133: #{forward.1} parent=1 // loop_footer
      %s456 = sadd.s32 %s454, 1
    $region134: #{forward.1} parent=1 // loop_footer_branch
      %453 = sbr.rel target = $region130
    $region135: #{forward.1} parent=1 // loop_exit
      _
    %464 = vst.msk [vmem:[#allocation2 + $0x3] sm:$0x1] %vm314, %v459
    %s465 = sld [smem:[#allocation6 + %s417]]
    %s466 = sadd.s32 %s299, 13
    %s467 = sld [smem:[#allocation6 + %s466]]
    // While loop
    $region136: #{forward.1} parent=1 // loop_pre_header
      _
    $region137: #{forward.1} parent=1 // loop_header
      %s469 = sphi %s465, %s471
      %p470 = scmp.ge.s32.totalorder %s469, %s467
      %v474 = vphi 0.0, %v480
    $region138: #{forward.1} parent=1 // loop_header_branch
      %473 = sbr.rel (%p470) target = $region142
    $region139: #{forward.1} parent=1 // loop_body
      %s475 = sadd.s32 %s469, 16
      %s476 = sld [smem:[#allocation7 + %s475]]
      %s477 = sadd.s32 %s476, 40
      %s478 = scalar_lea.vmem [#allocation12], %s477
      %v479 = vld [vmem:[%s478] sm:$0x1]
      %v480 = vadd.f32 %v474, %v479
    $region140: #{forward.1} parent=1 // loop_footer
      %s471 = sadd.s32 %s469, 1
    $region141: #{forward.1} parent=1 // loop_footer_branch
      %468 = sbr.rel target = $region137
    $region142: #{forward.1} parent=1 // loop_exit
      _
    %481 = vst.msk [vmem:[#allocation3 + $0x3] sm:$0x1] %vm314, %v474
    %s482 = sld [smem:[#allocation6 + %s434]]
    %s483 = sadd.s32 %s299, 22
    %s484 = sld [smem:[#allocation6 + %s483]]
    // While loop
    $region143: #{forward.1} parent=1 // loop_pre_header
      _
    $region144: #{forward.1} parent=1 // loop_header
      %s486 = sphi %s482, %s488
      %p487 = scmp.ge.s32.totalorder %s486, %s484
      %v491 = vphi 0.0, %v497
    $region145: #{forward.1} parent=1 // loop_header_branch
      %490 = sbr.rel (%p487) target = $region149
    $region146: #{forward.1} parent=1 // loop_body
      %s492 = sadd.s32 %s486, 32
      %s493 = sld [smem:[#allocation7 + %s492]]
      %s494 = sadd.s32 %s493, 72
      %s495 = scalar_lea.vmem [#allocation12], %s494
      %v496 = vld [vmem:[%s495] sm:$0x1]
      %v497 = vadd.f32 %v491, %v496
    $region147: #{forward.1} parent=1 // loop_footer
      %s488 = sadd.s32 %s486, 1
    $region148: #{forward.1} parent=1 // loop_footer_branch
      %485 = sbr.rel target = $region144
    $region149: #{forward.1} parent=1 // loop_exit
      _
    %498 = vst.msk [vmem:[#allocation4 + $0x3] sm:$0x1] %vm314, %v491
    %s499 = sld [smem:[#allocation6 + %s451]]
    %s500 = sadd.s32 %s299, 5
    %s501 = sld [smem:[#allocation6 + %s500]]
    // While loop
    $region150: #{forward.1} parent=1 // loop_pre_header
      _
    $region151: #{forward.1} parent=1 // loop_header
      %s503 = sphi %s499, %s505
      %p504 = scmp.ge.s32.totalorder %s503, %s501
      %v508 = vphi 0.0, %v512
    $region152: #{forward.1} parent=1 // loop_header_branch
      %507 = sbr.rel (%p504) target = $region156
    $region153: #{forward.1} parent=1 // loop_body
      %s509 = sld [smem:[#allocation7 + %s503]]
      %s510 = scalar_lea.vmem [#allocation12], %s509
      %v511 = vld [vmem:[%s510] sm:$0x1]
      %v512 = vadd.f32 %v508, %v511
    $region154: #{forward.1} parent=1 // loop_footer
      %s505 = sadd.s32 %s503, 1
    $region155: #{forward.1} parent=1 // loop_footer_branch
      %502 = sbr.rel target = $region151
    $region156: #{forward.1} parent=1 // loop_exit
      _
    %513 = vst.msk [vmem:[#allocation2 + $0x4] sm:$0x1] %vm314, %v508
    %s514 = sld [smem:[#allocation6 + %s466]]
    %s515 = sadd.s32 %s299, 14
    %s516 = sld [smem:[#allocation6 + %s515]]
    // While loop
    $region157: #{forward.1} parent=1 // loop_pre_header
      _
    $region158: #{forward.1} parent=1 // loop_header
      %s518 = sphi %s514, %s520
      %p519 = scmp.ge.s32.totalorder %s518, %s516
      %v523 = vphi 0.0, %v529
    $region159: #{forward.1} parent=1 // loop_header_branch
      %522 = sbr.rel (%p519) target = $region163
    $region160: #{forward.1} parent=1 // loop_body
      %s524 = sadd.s32 %s518, 16
      %s525 = sld [smem:[#allocation7 + %s524]]
      %s526 = sadd.s32 %s525, 40
      %s527 = scalar_lea.vmem [#allocation12], %s526
      %v528 = vld [vmem:[%s527] sm:$0x1]
      %v529 = vadd.f32 %v523, %v528
    $region161: #{forward.1} parent=1 // loop_footer
      %s520 = sadd.s32 %s518, 1
    $region162: #{forward.1} parent=1 // loop_footer_branch
      %517 = sbr.rel target = $region158
    $region163: #{forward.1} parent=1 // loop_exit
      _
    %530 = vst.msk [vmem:[#allocation3 + $0x4] sm:$0x1] %vm314, %v523
    %s531 = sld [smem:[#allocation6 + %s483]]
    %s532 = sadd.s32 %s299, 23
    %s533 = sld [smem:[#allocation6 + %s532]]
    // While loop
    $region164: #{forward.1} parent=1 // loop_pre_header
      _
    $region165: #{forward.1} parent=1 // loop_header
      %s535 = sphi %s531, %s537
      %p536 = scmp.ge.s32.totalorder %s535, %s533
      %v540 = vphi 0.0, %v546
    $region166: #{forward.1} parent=1 // loop_header_branch
      %539 = sbr.rel (%p536) target = $region170
    $region167: #{forward.1} parent=1 // loop_body
      %s541 = sadd.s32 %s535, 32
      %s542 = sld [smem:[#allocation7 + %s541]]
      %s543 = sadd.s32 %s542, 72
      %s544 = scalar_lea.vmem [#allocation12], %s543
      %v545 = vld [vmem:[%s544] sm:$0x1]
      %v546 = vadd.f32 %v540, %v545
    $region168: #{forward.1} parent=1 // loop_footer
      %s537 = sadd.s32 %s535, 1
    $region169: #{forward.1} parent=1 // loop_footer_branch
      %534 = sbr.rel target = $region165
    $region170: #{forward.1} parent=1 // loop_exit
      _
    %547 = vst.msk [vmem:[#allocation4 + $0x4] sm:$0x1] %vm314, %v540
    %s548 = sld [smem:[#allocation6 + %s500]]
    %s549 = sadd.s32 %s299, 6
    %s550 = sld [smem:[#allocation6 + %s549]]
    // While loop
    $region171: #{forward.1} parent=1 // loop_pre_header
      _
    $region172: #{forward.1} parent=1 // loop_header
      %s552 = sphi %s548, %s554
      %p553 = scmp.ge.s32.totalorder %s552, %s550
      %v557 = vphi 0.0, %v561
    $region173: #{forward.1} parent=1 // loop_header_branch
      %556 = sbr.rel (%p553) target = $region177
    $region174: #{forward.1} parent=1 // loop_body
      %s558 = sld [smem:[#allocation7 + %s552]]
      %s559 = scalar_lea.vmem [#allocation12], %s558
      %v560 = vld [vmem:[%s559] sm:$0x1]
      %v561 = vadd.f32 %v557, %v560
    $region175: #{forward.1} parent=1 // loop_footer
      %s554 = sadd.s32 %s552, 1
    $region176: #{forward.1} parent=1 // loop_footer_branch
      %551 = sbr.rel target = $region172
    $region177: #{forward.1} parent=1 // loop_exit
      _
    %562 = vst.msk [vmem:[#allocation2 + $0x5] sm:$0x1] %vm314, %v557
    %s563 = sld [smem:[#allocation6 + %s515]]
    %s564 = sadd.s32 %s299, 15
    %s565 = sld [smem:[#allocation6 + %s564]]
    // While loop
    $region178: #{forward.1} parent=1 // loop_pre_header
      _
    $region179: #{forward.1} parent=1 // loop_header
      %s567 = sphi %s563, %s569
      %p568 = scmp.ge.s32.totalorder %s567, %s565
      %v572 = vphi 0.0, %v578
    $region180: #{forward.1} parent=1 // loop_header_branch
      %571 = sbr.rel (%p568) target = $region184
    $region181: #{forward.1} parent=1 // loop_body
      %s573 = sadd.s32 %s567, 16
      %s574 = sld [smem:[#allocation7 + %s573]]
      %s575 = sadd.s32 %s574, 40
      %s576 = scalar_lea.vmem [#allocation12], %s575
      %v577 = vld [vmem:[%s576] sm:$0x1]
      %v578 = vadd.f32 %v572, %v577
    $region182: #{forward.1} parent=1 // loop_footer
      %s569 = sadd.s32 %s567, 1
    $region183: #{forward.1} parent=1 // loop_footer_branch
      %566 = sbr.rel target = $region179
    $region184: #{forward.1} parent=1 // loop_exit
      _
    %579 = vst.msk [vmem:[#allocation3 + $0x5] sm:$0x1] %vm314, %v572
    %s580 = sld [smem:[#allocation6 + %s532]]
    %s581 = sadd.s32 %s299, 24
    %s582 = sld [smem:[#allocation6 + %s581]]
    // While loop
    $region185: #{forward.1} parent=1 // loop_pre_header
      _
    $region186: #{forward.1} parent=1 // loop_header
      %s584 = sphi %s580, %s586
      %p585 = scmp.ge.s32.totalorder %s584, %s582
      %v589 = vphi 0.0, %v595
    $region187: #{forward.1} parent=1 // loop_header_branch
      %588 = sbr.rel (%p585) target = $region191
    $region188: #{forward.1} parent=1 // loop_body
      %s590 = sadd.s32 %s584, 32
      %s591 = sld [smem:[#allocation7 + %s590]]
      %s592 = sadd.s32 %s591, 72
      %s593 = scalar_lea.vmem [#allocation12], %s592
      %v594 = vld [vmem:[%s593] sm:$0x1]
      %v595 = vadd.f32 %v589, %v594
    $region189: #{forward.1} parent=1 // loop_footer
      %s586 = sadd.s32 %s584, 1
    $region190: #{forward.1} parent=1 // loop_footer_branch
      %583 = sbr.rel target = $region186
    $region191: #{forward.1} parent=1 // loop_exit
      _
    %596 = vst.msk [vmem:[#allocation4 + $0x5] sm:$0x1] %vm314, %v589
    %s597 = sld [smem:[#allocation6 + %s549]]
    %s598 = sadd.s32 %s299, 7
    %s599 = sld [smem:[#allocation6 + %s598]]
    // While loop
    $region192: #{forward.1} parent=1 // loop_pre_header
      _
    $region193: #{forward.1} parent=1 // loop_header
      %s601 = sphi %s597, %s603
      %p602 = scmp.ge.s32.totalorder %s601, %s599
      %v606 = vphi 0.0, %v610
    $region194: #{forward.1} parent=1 // loop_header_branch
      %605 = sbr.rel (%p602) target = $region198
    $region195: #{forward.1} parent=1 // loop_body
      %s607 = sld [smem:[#allocation7 + %s601]]
      %s608 = scalar_lea.vmem [#allocation12], %s607
      %v609 = vld [vmem:[%s608] sm:$0x1]
      %v610 = vadd.f32 %v606, %v609
    $region196: #{forward.1} parent=1 // loop_footer
      %s603 = sadd.s32 %s601, 1
    $region197: #{forward.1} parent=1 // loop_footer_branch
      %600 = sbr.rel target = $region193
    $region198: #{forward.1} parent=1 // loop_exit
      _
    %611 = vst.msk [vmem:[#allocation2 + $0x6] sm:$0x1] %vm314, %v606
    %s612 = sld [smem:[#allocation6 + %s564]]
    %s613 = sadd.s32 %s299, 16
    %s614 = sld [smem:[#allocation6 + %s613]]
    // While loop
    $region199: #{forward.1} parent=1 // loop_pre_header
      _
    $region200: #{forward.1} parent=1 // loop_header
      %s616 = sphi %s612, %s618
      %p617 = scmp.ge.s32.totalorder %s616, %s614
      %v621 = vphi 0.0, %v627
    $region201: #{forward.1} parent=1 // loop_header_branch
      %620 = sbr.rel (%p617) target = $region205
    $region202: #{forward.1} parent=1 // loop_body
      %s622 = sadd.s32 %s616, 16
      %s623 = sld [smem:[#allocation7 + %s622]]
      %s624 = sadd.s32 %s623, 40
      %s625 = scalar_lea.vmem [#allocation12], %s624
      %v626 = vld [vmem:[%s625] sm:$0x1]
      %v627 = vadd.f32 %v621, %v626
    $region203: #{forward.1} parent=1 // loop_footer
      %s618 = sadd.s32 %s616, 1
    $region204: #{forward.1} parent=1 // loop_footer_branch
      %615 = sbr.rel target = $region200
    $region205: #{forward.1} parent=1 // loop_exit
      _
    %628 = vst.msk [vmem:[#allocation3 + $0x6] sm:$0x1] %vm314, %v621
    %s629 = sld [smem:[#allocation6 + %s581]]
    %s630 = sadd.s32 %s299, 25
    %s631 = sld [smem:[#allocation6 + %s630]]
    // While loop
    $region206: #{forward.1} parent=1 // loop_pre_header
      _
    $region207: #{forward.1} parent=1 // loop_header
      %s633 = sphi %s629, %s635
      %p634 = scmp.ge.s32.totalorder %s633, %s631
      %v638 = vphi 0.0, %v644
    $region208: #{forward.1} parent=1 // loop_header_branch
      %637 = sbr.rel (%p634) target = $region212
    $region209: #{forward.1} parent=1 // loop_body
      %s639 = sadd.s32 %s633, 32
      %s640 = sld [smem:[#allocation7 + %s639]]
      %s641 = sadd.s32 %s640, 72
      %s642 = scalar_lea.vmem [#allocation12], %s641
      %v643 = vld [vmem:[%s642] sm:$0x1]
      %v644 = vadd.f32 %v638, %v643
    $region210: #{forward.1} parent=1 // loop_footer
      %s635 = sadd.s32 %s633, 1
    $region211: #{forward.1} parent=1 // loop_footer_branch
      %632 = sbr.rel target = $region207
    $region212: #{forward.1} parent=1 // loop_exit
      _
    %645 = vst.msk [vmem:[#allocation4 + $0x6] sm:$0x1] %vm314, %v638
    %s646 = sld [smem:[#allocation6 + %s598]]
    %s647 = sadd.s32 %s299, 8
    %s648 = sld [smem:[#allocation6 + %s647]]
    // While loop
    $region213: #{forward.1} parent=1 // loop_pre_header
      _
    $region214: #{forward.1} parent=1 // loop_header
      %s650 = sphi %s646, %s652
      %p651 = scmp.ge.s32.totalorder %s650, %s648
      %v655 = vphi 0.0, %v659
    $region215: #{forward.1} parent=1 // loop_header_branch
      %654 = sbr.rel (%p651) target = $region219
    $region216: #{forward.1} parent=1 // loop_body
      %s656 = sld [smem:[#allocation7 + %s650]]
      %s657 = scalar_lea.vmem [#allocation12], %s656
      %v658 = vld [vmem:[%s657] sm:$0x1]
      %v659 = vadd.f32 %v655, %v658
    $region217: #{forward.1} parent=1 // loop_footer
      %s652 = sadd.s32 %s650, 1
    $region218: #{forward.1} parent=1 // loop_footer_branch
      %649 = sbr.rel target = $region214
    $region219: #{forward.1} parent=1 // loop_exit
      _
    %660 = vst.msk [vmem:[#allocation2 + $0x7] sm:$0x1] %vm314, %v655
    %s661 = sld [smem:[#allocation6 + %s613]]
    %s662 = sadd.s32 %s299, 17
    %s663 = sld [smem:[#allocation6 + %s662]]
    // While loop
    $region220: #{forward.1} parent=1 // loop_pre_header
      _
    $region221: #{forward.1} parent=1 // loop_header
      %s665 = sphi %s661, %s667
      %p666 = scmp.ge.s32.totalorder %s665, %s663
      %v670 = vphi 0.0, %v676
    $region222: #{forward.1} parent=1 // loop_header_branch
      %669 = sbr.rel (%p666) target = $region226
    $region223: #{forward.1} parent=1 // loop_body
      %s671 = sadd.s32 %s665, 16
      %s672 = sld [smem:[#allocation7 + %s671]]
      %s673 = sadd.s32 %s672, 40
      %s674 = scalar_lea.vmem [#allocation12], %s673
      %v675 = vld [vmem:[%s674] sm:$0x1]
      %v676 = vadd.f32 %v670, %v675
    $region224: #{forward.1} parent=1 // loop_footer
      %s667 = sadd.s32 %s665, 1
    $region225: #{forward.1} parent=1 // loop_footer_branch
      %664 = sbr.rel target = $region221
    $region226: #{forward.1} parent=1 // loop_exit
      _
    %677 = vst.msk [vmem:[#allocation3 + $0x7] sm:$0x1] %vm314, %v670
    %s678 = sld [smem:[#allocation6 + %s630]]
    %s679 = sadd.s32 %s299, 26
    %s680 = sld [smem:[#allocation6 + %s679]]
    // While loop
    $region227: #{forward.1} parent=1 // loop_pre_header
      _
    $region228: #{forward.1} parent=1 // loop_header
      %s682 = sphi %s678, %s684
      %p683 = scmp.ge.s32.totalorder %s682, %s680
      %v687 = vphi 0.0, %v693
    $region229: #{forward.1} parent=1 // loop_header_branch
      %686 = sbr.rel (%p683) target = $region233
    $region230: #{forward.1} parent=1 // loop_body
      %s688 = sadd.s32 %s682, 32
      %s689 = sld [smem:[#allocation7 + %s688]]
      %s690 = sadd.s32 %s689, 72
      %s691 = scalar_lea.vmem [#allocation12], %s690
      %v692 = vld [vmem:[%s691] sm:$0x1]
      %v693 = vadd.f32 %v687, %v692
    $region231: #{forward.1} parent=1 // loop_footer
      %s684 = sadd.s32 %s682, 1
    $region232: #{forward.1} parent=1 // loop_footer_branch
      %681 = sbr.rel target = $region228
    $region233: #{forward.1} parent=1 // loop_exit
      _
    %694 = vst.msk [vmem:[#allocation4 + $0x7] sm:$0x1] %vm314, %v687
    %v695 = vld [vmem:[#allocation2] sm:$0xff]
    %v696 = vld [vmem:[#allocation3] sm:$0xff]
    %v697 = vld [vmem:[#allocation4] sm:$0xff]
    %v698 = vmul.f32 %v695, %v298
    %vm699 = vcmask 130048
    %v700 = vsel %vm699, %v698, 0.0
    %701 = vadd.xlane.f32.xlu0 %v700
    %v702 = vpop.xlane.xlu0 %701
    %v703 = vmul.f32 %v696, %v298
    %v704 = vsel %vm699, %v703, 0.0
    %705 = vadd.xlane.f32.xlu0 %v704
    %v706 = vpop.xlane.xlu0 %705
    %v707 = vmul.f32 %v696, %v695
    %v708 = vsel %vm699, %v707, 0.0
    %709 = vadd.xlane.f32.xlu0 %v708
    %v710 = vpop.xlane.xlu0 %709
    %v711 = vmul.f32 %v697, %v298
    %v712 = vsel %vm699, %v711, 0.0
    %713 = vadd.xlane.f32.xlu0 %v712
    %v714 = vpop.xlane.xlu0 %713
    %v715 = vmul.f32 %v697, %v695
    %v716 = vsel %vm699, %v715, 0.0
    %717 = vadd.xlane.f32.xlu0 %v716
    %v718 = vpop.xlane.xlu0 %717
    %v719 = vmul.f32 %v697, %v696
    %v720 = vsel %vm699, %v719, 0.0
    %721 = vadd.xlane.f32.xlu0 %v720
    %v722 = vpop.xlane.xlu0 %721
    %vm723 = vcmask 7168
    %v724 = vsel %vm723, %v702, %v706
    %vm725 = vcmask 15360
    %v726 = vsel %vm725, %v724, %v710
    %vm727 = vcmask 23552
    %v728 = vsel %vm727, %v726, %v714
    %vm729 = vcmask 31744
    %v730 = vsel %vm729, %v728, %v718
    %vm731 = vcmask 39936
    %v732 = vsel %vm731, %v730, %v722
    %vm733 = vcmask 48128
    %v734 = vsel %vm733, %v732, 0.0
    %vm735 = vcmask 56320
    %v736 = vsel %vm735, %v734, 0.0
    %v737 = vpack.c.bf16 %v298, %v298
    %v738 = vld [vmem:[#allocation13] sm:$0xf]
    %v739 = vld [vmem:[#allocation13 + $0x4] sm:$0xf]
    %v740 = vld [vmem:[#allocation13 + $0x8] sm:$0xf]
    %v741 = vld [vmem:[#allocation13 + $0xc] sm:$0xf]
    %v742 = vld [vmem:[#allocation13 + $0x10] sm:$0xf]
    %v743 = vld [vmem:[#allocation13 + $0x14] sm:$0xf]
    %v744 = vld [vmem:[#allocation13 + $0x18] sm:$0xf]
    %v745 = vld [vmem:[#allocation13 + $0x1c] sm:$0xf]
    %v746 = vld [vmem:[#allocation13 + $0x20] sm:$0xf]
    %v747 = vld [vmem:[#allocation13 + $0x24] sm:$0xf]
    %v748 = vld [vmem:[#allocation13 + $0x28] sm:$0xf]
    %v749 = vld [vmem:[#allocation13 + $0x2c] sm:$0xf]
    %v750 = vld [vmem:[#allocation13 + $0x30] sm:$0xf]
    %v751 = vld [vmem:[#allocation13 + $0x34] sm:$0xf]
    %v752 = vld [vmem:[#allocation13 + $0x38] sm:$0xf]
    %v753 = vld [vmem:[#allocation13 + $0x3c] sm:$0xf]
    %v754 = vpack.c.bf16 %v736, %v736
    %v755 = vld [vmem:[%s9] sm:$0xf]
    %vm756 = vcmask 64512
    %v758 = vsel %vm756, %v754, 0
    %vm760 = vcmask 1043456
    %v762 = vsel %vm760, %v755, 0
    %764 = vmatpush.bf16.msra.mxu0 0
    %765 = vmatpush.bf16.msra.mxu0 0
    %766 = vmatpush.bf16.msra.mxu0 0
    %767 = vmatpush.bf16.msra.mxu0 0
    %768 = vmatpush.bf16.msra.mxu0 0
    %769 = vmatpush.bf16.msra.mxu0 0
    %770 = vmatpush.bf16.msra.mxu0 0
    %771 = vmatpush.bf16.msra.mxu0 %v762
    %772 = vmatmul.bf16.gmra.mxu0 %v758
    %v773 = vpop.f32.mrf.mxu0
    %v774 = vadd.f32 0.0, %v773
    %v775 = vpop.f32.mrf.mxu0
    %776 = vdwg.mxu0
    %v793 = vunpack.c.l.b16 %v738
    %v794 = vunpack.c.l.b16 %v739
    %v795 = vunpack.c.l.b16 %v740
    %v796 = vunpack.c.l.b16 %v741
    %v797 = vunpack.c.l.b16 %v742
    %v798 = vunpack.c.l.b16 %v743
    %v799 = vunpack.c.l.b16 %v744
    %v800 = vunpack.c.l.b16 %v745
    %v801 = vunpack.c.l.b16 %v746
    %v802 = vunpack.c.l.b16 %v747
    %v803 = vunpack.c.l.b16 %v748
    %v804 = vunpack.c.l.b16 %v749
    %v805 = vunpack.c.l.b16 %v750
    %v806 = vunpack.c.l.b16 %v751
    %v807 = vunpack.c.l.b16 %v752
    %v808 = vunpack.c.l.b16 %v753
    %v809 = vpack.c.b16 %v794, %v793
    %v810 = vpack.c.b16 %v796, %v795
    %v811 = vpack.c.b16 %v798, %v797
    %v812 = vpack.c.b16 %v800, %v799
    %v813 = vpack.c.b16 %v802, %v801
    %v814 = vpack.c.b16 %v804, %v803
    %v815 = vpack.c.b16 %v806, %v805
    %v816 = vpack.c.b16 %v808, %v807
    %825 = vmatpush.bf16.msra.mxu0 %v816
    %826 = vmatpush.bf16.msra.mxu0 %v815
    %827 = vmatpush.bf16.msra.mxu0 %v814
    %828 = vmatpush.bf16.msra.mxu0 %v813
    %829 = vmatpush.bf16.msra.mxu0 %v812
    %830 = vmatpush.bf16.msra.mxu0 %v811
    %831 = vmatpush.bf16.msra.mxu0 %v810
    %832 = vmatpush.bf16.msra.mxu0 %v809
    %833 = vmatmul.bf16.gmra.mxu0 %v737
    %v834 = vpop.f32.mrf.mxu0
    %v835 = vadd.f32 %v774, %v834
    %v836 = vpop.f32.mrf.mxu0
    %837 = vdwg.mxu0
    %v838 = vld [vmem:[%s10] sm:$0x1]
    %v840 = vperm.slane %v838, 0
    %v842 = vadd.f32 %v835, %v840
    %v843 = vmax.f32 %v842, 0.0
    %v844 = vld [vmem:[#allocation15] sm:$0xf]
    %v845 = vld [vmem:[#allocation15 + $0x4] sm:$0xf]
    %v846 = vld [vmem:[#allocation15 + $0x8] sm:$0xf]
    %v847 = vld [vmem:[#allocation15 + $0xc] sm:$0xf]
    %v848 = vld [vmem:[#allocation15 + $0x10] sm:$0xf]
    %v849 = vld [vmem:[#allocation15 + $0x14] sm:$0xf]
    %v850 = vld [vmem:[#allocation15 + $0x18] sm:$0xf]
    %v851 = vld [vmem:[#allocation15 + $0x1c] sm:$0xf]
    %v852 = vld [vmem:[#allocation15 + $0x20] sm:$0xf]
    %v853 = vld [vmem:[#allocation15 + $0x24] sm:$0xf]
    %v854 = vld [vmem:[#allocation15 + $0x28] sm:$0xf]
    %v855 = vld [vmem:[#allocation15 + $0x2c] sm:$0xf]
    %v856 = vld [vmem:[#allocation15 + $0x30] sm:$0xf]
    %v857 = vld [vmem:[#allocation15 + $0x34] sm:$0xf]
    %v858 = vld [vmem:[#allocation15 + $0x38] sm:$0xf]
    %v859 = vld [vmem:[#allocation15 + $0x3c] sm:$0xf]
    %v860 = vld [vmem:[%s12] sm:$0x1]
    %v861 = vpack.c.bf16 %v843, %v843
    %v863 = vperm.slane %v860, 0
    %v881 = vunpack.c.l.b16 %v844
    %v882 = vunpack.c.l.b16 %v845
    %v883 = vunpack.c.l.b16 %v846
    %v884 = vunpack.c.l.b16 %v847
    %v885 = vunpack.c.l.b16 %v848
    %v886 = vunpack.c.l.b16 %v849
    %v887 = vunpack.c.l.b16 %v850
    %v888 = vunpack.c.l.b16 %v851
    %v889 = vunpack.c.l.b16 %v852
    %v890 = vunpack.c.l.b16 %v853
    %v891 = vunpack.c.l.b16 %v854
    %v892 = vunpack.c.l.b16 %v855
    %v893 = vunpack.c.l.b16 %v856
    %v894 = vunpack.c.l.b16 %v857
    %v895 = vunpack.c.l.b16 %v858
    %v896 = vunpack.c.l.b16 %v859
    %v897 = vpack.c.b16 %v882, %v881
    %v898 = vpack.c.b16 %v884, %v883
    %v899 = vpack.c.b16 %v886, %v885
    %v900 = vpack.c.b16 %v888, %v887
    %v901 = vpack.c.b16 %v890, %v889
    %v902 = vpack.c.b16 %v892, %v891
    %v903 = vpack.c.b16 %v894, %v893
    %v904 = vpack.c.b16 %v896, %v895
    %913 = vmatpush.bf16.msra.mxu0 %v904
    %914 = vmatpush.bf16.msra.mxu0 %v903
    %915 = vmatpush.bf16.msra.mxu0 %v902
    %916 = vmatpush.bf16.msra.mxu0 %v901
    %917 = vmatpush.bf16.msra.mxu0 %v900
    %918 = vmatpush.bf16.msra.mxu0 %v899
    %919 = vmatpush.bf16.msra.mxu0 %v898
    %920 = vmatpush.bf16.msra.mxu0 %v897
    %921 = vmatmul.bf16.gmra.mxu0 %v861
    %v922 = vpop.f32.mrf.mxu0
    %v923 = vadd.f32 %v863, %v922
    %v924 = vpop.f32.mrf.mxu0
    %925 = vdwg.mxu0
    %v926 = vxor.u32 %v923, 2147483648
    %v927 = vmul.f32 %v926, 1.442695
    %v928 = vpow.pop %v927
    %v929 = vadd.f32 %v928, 1.0
    %v930 = vrcp.pop %v929
    %v931 = vmul.f32 %v929, %v930
    %v932 = vsub.f32 1.0, %v931
    %v933 = vmul.f32 %v930, %v932
    %v934 = vadd.f32 %v930, %v933
    %vm935 = vweird.f32 %v929
    %vm936 = vweird.f32 %v930
    %vm937 = vmor %vm935, %vm936
    %v938 = vsel %vm937, %v930, %v934
    %v939 = vand.u32 2147483647, %v929
    %vm940 = vcmp.eq.f32.partialorder %v939, 8.507059e+37
    %v941 = vand.u32 %v929, 2147483648
    %v942 = vor.u32 1.1754944e-38, %v941
    %v943 = vsel %vm940, %v942, %v938
    %v944 = vmul.f32 1.0, %v943
    %945 = vst [vmem:[%s13] sm:$0xff] %v944
    // Predicated region
    $region234: #{forward.1} parent=1 // pred_check
      _
    $region235: #{forward.1} parent=1 // pred_check_branch
      %947 = sbr.rel (0) target = $region237
    $region236: #{forward.1} parent=1 // pred_region
      _
    $region237: #{forward.1} parent=1 // pred_fallthru
      _
    // Predicated region
    $region238: #{forward.1} parent=1 // pred_check
      _
    $region239: #{forward.1} parent=1 // pred_check_branch
      %949 = sbr.rel (0) target = $region241
    $region240: #{forward.1} parent=1 // pred_region
      _
    $region241: #{forward.1} parent=1 // pred_fallthru
      _
    %950 = vsyncpa [#allocation9], 1
    %951 = vsyncpa [#allocation11], 1
    %952 = vsyncpa [#allocation14], 1

</llo_original>
